<compile_context>
chip_gen: v6e
topology: v6e:2x2x1
jax: 0.10.0
libtpu: 0.0.40
codegen_flags: <defaults>
</compile_context>

<pallas_src>
import math

import jax
import jax.numpy as jnp
from jax.experimental import pallas as pl
from jax.experimental.pallas import tpu as pltpu


def _lognet_kernel(a_ref, x_ref, w_ref, b_ref, wf_ref, bf_ref, o_ref, xw_ref, acc_ref):
    # a_ref : [C, tile_n, tile_k]   adj tile (native layout, any float dtype)
    # x_ref : [N, in]               full node features for this batch element (bf16)
    # w_ref : [C, in, out]          per-channel weights (bf16)
    # b_ref : [C, 1, out]           per-channel bias (f32)
    # wf_ref: [out, out]            final Linear weight, y = h @ wf (bf16)
    # bf_ref: [1, out]              final Linear bias (f32)
    # o_ref : [tile_n, out]         output tile (f32)
    # xw_ref : VMEM [C, N, out]     bf16 scratch holding X @ W_c (per batch element)
    # acc_ref: VMEM [C, tile_n, out] f32 per-channel accumulators over the src axis
    C, tile_n, tile_k = a_ref.shape
    out_feats = w_ref.shape[2]
    r = pl.program_id(1)   # destination-row tile
    k = pl.program_id(2)   # source-node (reduction) tile

    # ---- hoisted once per batch element: xw[c] = X @ W_c (grid-invariant in r, k) ----
    @pl.when(jnp.logical_and(r == 0, k == 0))
    def _compute_xw():
        x_all = x_ref[...]
        for c in range(C):
            xw_ref[c] = jnp.dot(
                x_all, w_ref[c], preferred_element_type=jnp.float32
            ).astype(xw_ref.dtype)

    # ---- init per (batch, row-tile): zero the per-channel accumulators ----
    @pl.when(k == 0)
    def _init():
        acc_ref[...] = jnp.zeros_like(acc_ref)

    # ---- accumulate message passing over this source-node tile, per channel ----
    src0 = pl.multiple_of(k * tile_k, tile_k)
    for c in range(C):
        a_c = a_ref[c].astype(jnp.bfloat16)                       # in-register cast
        acc_ref[c] += jnp.dot(
            a_c, xw_ref[c, pl.ds(src0, tile_k), :],
            preferred_element_type=jnp.float32)

    # ---- finalize: bias + ReLU per channel, channel-sum, fused final Linear ----
    @pl.when(k == pl.num_programs(2) - 1)
    def _finalize():
        s = jnp.zeros((tile_n, out_feats), jnp.float32)
        for c in range(C):
            s = s + jnp.maximum(acc_ref[c] + b_ref[c], 0.0)
        y = jnp.dot(s.astype(jnp.bfloat16), wf_ref[...],
                    preferred_element_type=jnp.float32) + bf_ref[...]
        o_ref[...] = y.astype(o_ref.dtype)


def lognet_conv_layer(adj, x, weight, bias, w_final, b_final, *,
                      row_tile=256, k_tile=512):
    """Fused LogNetConvLayer forward (aggr_mode='sum').

    adj    : [B, C, N, N] (or [C, N, N]) per-channel dense edge weights, dst x src,
             kept in native layout/dtype (callers reusing adj across layers should
             pre-cast to bf16 once outside).
    x      : [B, N, in]  (or [N, in]) node states.
    weight : [C, in, out]   (PyTorch stores [in, out, C]; permute once by the caller)
    bias   : [C, out]
    w_final: [out, out] pre-transposed so that y = h @ w_final
    b_final: [out]
    """
    squeeze_batch = (adj.ndim == 3)
    if squeeze_batch:
        adj = adj[None]
        x = x[None]
    B, C, N, N2 = adj.shape
    assert N2 == N
    in_feats = x.shape[-1]
    out_feats = weight.shape[-1]
    assert x.shape == (B, N, in_feats)
    assert weight.shape == (C, in_feats, out_feats)
    assert bias.shape == (C, out_feats)
    assert w_final.shape == (out_feats, out_feats)   # aggr_mode='sum'

    # destination-row tile and source-node (reduction) tile
    tile_n = N if N <= row_tile else row_tile
    tile_k = N if N <= k_tile else k_tile
    assert N % tile_n == 0, "TODO(synk): ragged destination-row tiles not handled"
    assert N % tile_k == 0, "TODO(synk): ragged source-node tiles not handled"
    assert tile_n == N or tile_n % 8 == 0
    assert tile_k == N or tile_k % 128 == 0
    num_r = N // tile_n
    num_k = N // tile_k

    # small parameters: cast/reshape in the wrapper (negligible vs adj traffic)
    x_b = x.astype(jnp.bfloat16)
    w_b = weight.astype(jnp.bfloat16)
    b3 = bias.reshape(C, 1, out_feats).astype(jnp.float32)
    wf_b = w_final.astype(jnp.bfloat16)
    bf2 = b_final.reshape(1, out_feats).astype(jnp.float32)

    grid_spec = pltpu.PrefetchScalarGridSpec(
        num_scalar_prefetch=0,
        grid=(B, num_r, num_k),
        in_specs=[
            # adj: native [B, C, N, N]; stream a [C, tile_n, tile_k] block
            pl.BlockSpec((pl.Squeezed(), C, tile_n, tile_k),
                         lambda b, r, k: (b, 0, r, k)),
            # x: full [N, in] per batch element (tiny); DMA'd only when b changes
            pl.BlockSpec((pl.Squeezed(), N, in_feats), lambda b, r, k: (b, 0, 0)),
            # parameters: whole, grid-invariant
            pl.BlockSpec((C, in_feats, out_feats), lambda b, r, k: (0, 0, 0)),
            pl.BlockSpec((C, 1, out_feats), lambda b, r, k: (0, 0, 0)),
            pl.BlockSpec((out_feats, out_feats), lambda b, r, k: (0, 0)),
            pl.BlockSpec((1, out_feats), lambda b, r, k: (0, 0)),
        ],
        out_specs=pl.BlockSpec((pl.Squeezed(), tile_n, out_feats),
                               lambda b, r, k: (b, r, 0)),
        scratch_shapes=[
            pltpu.VMEM((C, N, out_feats), jnp.bfloat16),       # xw = X @ W_c
            pltpu.VMEM((C, tile_n, out_feats), jnp.float32),   # per-channel accumulators
        ],
    )

    out = pl.pallas_call(
        _lognet_kernel,
        out_shape=jax.ShapeDtypeStruct((B, N, out_feats), jnp.float32),
        grid_spec=grid_spec,
        compiler_params=pltpu.CompilerParams(
            # batch axis feeds v7x's 2nd TensorCore; row/src axes carry scratch state
            dimension_semantics=("parallel", "arbitrary", "arbitrary")),
    )(adj, x_b, w_b, b3, wf_b, bf2)

    return out[0] if squeeze_batch else out


def lognet_reference(adj, x, weight, bias, w_final, b_final):
    # pure-JAX f32 reference of the same math (single graph), same association order
    xw = jnp.einsum('ni,cio->cno', x, weight)        # X @ W_c
    h = jnp.einsum('cnm,cmo->cno', adj, xw)          # A_c @ (X @ W_c)
    h = h + bias[:, None, :]
    h = jnp.maximum(h, 0.0)                          # ReLU
    h = h.sum(axis=0)                                # aggr_mode='sum'
    return h @ w_final + b_final                     # final Linear


def _bf16_round(a):
    return a.astype(jnp.bfloat16).astype(jnp.float32)


if __name__ == "__main__":
    # small shapes consistent with the module; batch of graphs amortizes call overhead
    B = 2             # number of graphs in the batch
    N = 16            # number of graph nodes
    in_feats = 16
    out_feats = 32
    num_channels = 8

    key = jax.random.PRNGKey(0)
    k_adj, k_x, k_w, k_b, k_wf, k_bf = jax.random.split(key, 6)

    # synthetic per-channel weighted adjacency (src_mul_edge weights, dense form)
    adj = jax.random.uniform(k_adj, (B, num_channels, N, N), jnp.float32)

    # node states
    x = jax.random.normal(k_x, (B, N, in_feats), jnp.float32)

    # parameters, initialized like reset_parameters() (uniform(-stdv, stdv))
    stdv = 1.0 / math.sqrt(out_feats)
    weight = jax.random.uniform(k_w, (num_channels, in_feats, out_feats), jnp.float32,
                                minval=-stdv, maxval=stdv)
    bias = jax.random.uniform(k_b, (num_channels, out_feats), jnp.float32,
                              minval=-stdv, maxval=stdv)
    # final nn.Linear(out_feats, out_feats); w_final stored pre-transposed (y = h @ w_final)
    w_final = jax.random.uniform(k_wf, (out_feats, out_feats), jnp.float32,
                                 minval=-stdv, maxval=stdv)
    b_final = jax.random.uniform(k_bf, (out_feats,), jnp.float32,
                                 minval=-stdv, maxval=stdv)

    out = jax.jit(lognet_conv_layer)(adj, x, weight, bias, w_final, b_final)
    out = jax.block_until_ready(out)

    # reference uses the same bf16-rounded inputs the kernel sees; accumulation is f32
    ref = jax.vmap(lognet_reference, in_axes=(0, 0, None, None, None, None))(
        _bf16_round(adj), _bf16_round(x), _bf16_round(weight), bias,
        _bf16_round(w_final), b_final)

    assert out.shape == (B, N, out_feats)
    max_diff = jnp.max(jnp.abs(out - ref))
    assert jnp.allclose(out, ref, atol=3e-2, rtol=3e-2), \
        f"mismatch vs reference, max abs diff = {max_diff}"

    print("KERNEL_OK")
</pallas_src>

<mosaic_0001>
module attributes {stable_mosaic.version = 11 : i64} {
  func.func @_lognet_kernel(%arg0: i32, %arg1: i32, %arg2: i32, %arg3: memref<1x8x16x16xf32, #tpu.memory_space<vmem>>, %arg4: memref<1x16x16xbf16, #tpu.memory_space<vmem>>, %arg5: memref<8x16x32xbf16, #tpu.memory_space<vmem>>, %arg6: memref<8x1x32xf32, #tpu.memory_space<vmem>>, %arg7: memref<32x32xbf16, #tpu.memory_space<vmem>>, %arg8: memref<1x32xf32, #tpu.memory_space<vmem>>, %arg9: memref<1x16x32xf32, #tpu.memory_space<vmem>>, %arg10: memref<8x16x32xbf16, #tpu.memory_space<vmem>>, %arg11: memref<8x16x32xf32, #tpu.memory_space<vmem>>) attributes {dimension_semantics = [#tpu.dimension_semantics<parallel>, #tpu.dimension_semantics<arbitrary>, #tpu.dimension_semantics<arbitrary>], iteration_bounds = array<i64: 2, 1, 1>, scalar_prefetch = 0 : i64, scratch_operands = 2 : i64, tpu.core_type = #tpu.core_type<tc>, window_params = [{transform_indices = @transform_0, window_bounds = array<i64: 1, 8, 16, 16>}, {transform_indices = @transform_1, window_bounds = array<i64: 1, 16, 16>}, {pipeline_mode = #tpu.pipeline_mode<synchronous>, transform_indices = @transform_2, window_bounds = array<i64: 8, 16, 32>}, {pipeline_mode = #tpu.pipeline_mode<synchronous>, transform_indices = @transform_3, window_bounds = array<i64: 8, 1, 32>}, {pipeline_mode = #tpu.pipeline_mode<synchronous>, transform_indices = @transform_4, window_bounds = array<i64: 32, 32>}, {pipeline_mode = #tpu.pipeline_mode<synchronous>, transform_indices = @transform_5, window_bounds = array<i64: 1, 32>}, {transform_indices = @transform_6, window_bounds = array<i64: 1, 16, 32>}]} {
    %c0_i32 = arith.constant 0 : i32
    %0 = arith.cmpi eq, %arg1, %c0_i32 : i32
    %c0_i32_0 = arith.constant 0 : i32
    %1 = arith.cmpi eq, %arg2, %c0_i32_0 : i32
    %2 = arith.andi %0, %1 : i1
    %3 = arith.extui %2 : i1 to i32
    %c0_i32_1 = arith.constant 0 : i32
    %4 = arith.cmpi ne, %3, %c0_i32_1 : i32
    scf.if %4 {
      %c0_101 = arith.constant 0 : index
      %c0_102 = arith.constant 0 : index
      %c0_103 = arith.constant 0 : index
      %117 = vector.load %arg4[%c0_101, %c0_102, %c0_103] : memref<1x16x16xbf16, #tpu.memory_space<vmem>>, vector<1x16x16xbf16>
      %118 = vector.shape_cast %117 : vector<1x16x16xbf16> to vector<16x16xbf16>
      %c0_104 = arith.constant 0 : index
      %c0_105 = arith.constant 0 : index
      %c0_106 = arith.constant 0 : index
      %119 = vector.load %arg5[%c0_104, %c0_105, %c0_106] : memref<8x16x32xbf16, #tpu.memory_space<vmem>>, vector<1x16x32xbf16>
      %120 = vector.shape_cast %119 : vector<1x16x32xbf16> to vector<16x32xbf16>
      %cst_107 = arith.constant dense<0.000000e+00> : vector<16x32xf32>
      %121 = tpu.matmul %118, %120, %cst_107 {dimension_numbers = #tpu.dot_dimension_numbers<[1], [0], [0], [1], [0, 0, 1, 1], [], []>} : vector<16x16xbf16>, vector<16x32xbf16>, vector<16x32xf32> -> vector<16x32xf32>
      %122 = arith.truncf %121 : vector<16x32xf32> to vector<16x32xbf16>
      %c0_108 = arith.constant 0 : index
      %c0_109 = arith.constant 0 : index
      %c0_110 = arith.constant 0 : index
      %123 = vector.load %arg10[%c0_108, %c0_109, %c0_110] : memref<8x16x32xbf16, #tpu.memory_space<vmem>>, vector<1x16x32xbf16>
      %124 = vector.shape_cast %123 : vector<1x16x32xbf16> to vector<16x32xbf16>
      %125 = vector.shape_cast %122 : vector<16x32xbf16> to vector<1x16x32xbf16>
      tpu.vector_store %arg10[%c0_108, %c0_109, %c0_110], %125 {strides = array<i32>} : memref<8x16x32xbf16, #tpu.memory_space<vmem>>, vector<1x16x32xbf16>,
      %c1_111 = arith.constant 1 : index
      %c0_112 = arith.constant 0 : index
      %c0_113 = arith.constant 0 : index
      %126 = vector.load %arg5[%c1_111, %c0_112, %c0_113] : memref<8x16x32xbf16, #tpu.memory_space<vmem>>, vector<1x16x32xbf16>
      %127 = vector.shape_cast %126 : vector<1x16x32xbf16> to vector<16x32xbf16>
      %cst_114 = arith.constant dense<0.000000e+00> : vector<16x32xf32>
      %128 = tpu.matmul %118, %127, %cst_114 {dimension_numbers = #tpu.dot_dimension_numbers<[1], [0], [0], [1], [0, 0, 1, 1], [], []>} : vector<16x16xbf16>, vector<16x32xbf16>, vector<16x32xf32> -> vector<16x32xf32>
      %129 = arith.truncf %128 : vector<16x32xf32> to vector<16x32xbf16>
      %c1_115 = arith.constant 1 : index
      %c0_116 = arith.constant 0 : index
      %c0_117 = arith.constant 0 : index
      %130 = vector.load %arg10[%c1_115, %c0_116, %c0_117] : memref<8x16x32xbf16, #tpu.memory_space<vmem>>, vector<1x16x32xbf16>
      %131 = vector.shape_cast %130 : vector<1x16x32xbf16> to vector<16x32xbf16>
      %132 = vector.shape_cast %129 : vector<16x32xbf16> to vector<1x16x32xbf16>
      tpu.vector_store %arg10[%c1_115, %c0_116, %c0_117], %132 {strides = array<i32>} : memref<8x16x32xbf16, #tpu.memory_space<vmem>>, vector<1x16x32xbf16>,
      %c2_118 = arith.constant 2 : index
      %c0_119 = arith.constant 0 : index
      %c0_120 = arith.constant 0 : index
      %133 = vector.load %arg5[%c2_118, %c0_119, %c0_120] : memref<8x16x32xbf16, #tpu.memory_space<vmem>>, vector<1x16x32xbf16>
      %134 = vector.shape_cast %133 : vector<1x16x32xbf16> to vector<16x32xbf16>
      %cst_121 = arith.constant dense<0.000000e+00> : vector<16x32xf32>
      %135 = tpu.matmul %118, %134, %cst_121 {dimension_numbers = #tpu.dot_dimension_numbers<[1], [0], [0], [1], [0, 0, 1, 1], [], []>} : vector<16x16xbf16>, vector<16x32xbf16>, vector<16x32xf32> -> vector<16x32xf32>
      %136 = arith.truncf %135 : vector<16x32xf32> to vector<16x32xbf16>
      %c2_122 = arith.constant 2 : index
      %c0_123 = arith.constant 0 : index
      %c0_124 = arith.constant 0 : index
      %137 = vector.load %arg10[%c2_122, %c0_123, %c0_124] : memref<8x16x32xbf16, #tpu.memory_space<vmem>>, vector<1x16x32xbf16>
      %138 = vector.shape_cast %137 : vector<1x16x32xbf16> to vector<16x32xbf16>
      %139 = vector.shape_cast %136 : vector<16x32xbf16> to vector<1x16x32xbf16>
      tpu.vector_store %arg10[%c2_122, %c0_123, %c0_124], %139 {strides = array<i32>} : memref<8x16x32xbf16, #tpu.memory_space<vmem>>, vector<1x16x32xbf16>,
      %c3_125 = arith.constant 3 : index
      %c0_126 = arith.constant 0 : index
      %c0_127 = arith.constant 0 : index
      %140 = vector.load %arg5[%c3_125, %c0_126, %c0_127] : memref<8x16x32xbf16, #tpu.memory_space<vmem>>, vector<1x16x32xbf16>
      %141 = vector.shape_cast %140 : vector<1x16x32xbf16> to vector<16x32xbf16>
      %cst_128 = arith.constant dense<0.000000e+00> : vector<16x32xf32>
      %142 = tpu.matmul %118, %141, %cst_128 {dimension_numbers = #tpu.dot_dimension_numbers<[1], [0], [0], [1], [0, 0, 1, 1], [], []>} : vector<16x16xbf16>, vector<16x32xbf16>, vector<16x32xf32> -> vector<16x32xf32>
      %143 = arith.truncf %142 : vector<16x32xf32> to vector<16x32xbf16>
      %c3_129 = arith.constant 3 : index
      %c0_130 = arith.constant 0 : index
      %c0_131 = arith.constant 0 : index
      %144 = vector.load %arg10[%c3_129, %c0_130, %c0_131] : memref<8x16x32xbf16, #tpu.memory_space<vmem>>, vector<1x16x32xbf16>
      %145 = vector.shape_cast %144 : vector<1x16x32xbf16> to vector<16x32xbf16>
      %146 = vector.shape_cast %143 : vector<16x32xbf16> to vector<1x16x32xbf16>
      tpu.vector_store %arg10[%c3_129, %c0_130, %c0_131], %146 {strides = array<i32>} : memref<8x16x32xbf16, #tpu.memory_space<vmem>>, vector<1x16x32xbf16>,
      %c4_132 = arith.constant 4 : index
      %c0_133 = arith.constant 0 : index
      %c0_134 = arith.constant 0 : index
      %147 = vector.load %arg5[%c4_132, %c0_133, %c0_134] : memref<8x16x32xbf16, #tpu.memory_space<vmem>>, vector<1x16x32xbf16>
      %148 = vector.shape_cast %147 : vector<1x16x32xbf16> to vector<16x32xbf16>
      %cst_135 = arith.constant dense<0.000000e+00> : vector<16x32xf32>
      %149 = tpu.matmul %118, %148, %cst_135 {dimension_numbers = #tpu.dot_dimension_numbers<[1], [0], [0], [1], [0, 0, 1, 1], [], []>} : vector<16x16xbf16>, vector<16x32xbf16>, vector<16x32xf32> -> vector<16x32xf32>
      %150 = arith.truncf %149 : vector<16x32xf32> to vector<16x32xbf16>
      %c4_136 = arith.constant 4 : index
      %c0_137 = arith.constant 0 : index
      %c0_138 = arith.constant 0 : index
      %151 = vector.load %arg10[%c4_136, %c0_137, %c0_138] : memref<8x16x32xbf16, #tpu.memory_space<vmem>>, vector<1x16x32xbf16>
      %152 = vector.shape_cast %151 : vector<1x16x32xbf16> to vector<16x32xbf16>
      %153 = vector.shape_cast %150 : vector<16x32xbf16> to vector<1x16x32xbf16>
      tpu.vector_store %arg10[%c4_136, %c0_137, %c0_138], %153 {strides = array<i32>} : memref<8x16x32xbf16, #tpu.memory_space<vmem>>, vector<1x16x32xbf16>,
      %c5_139 = arith.constant 5 : index
      %c0_140 = arith.constant 0 : index
      %c0_141 = arith.constant 0 : index
      %154 = vector.load %arg5[%c5_139, %c0_140, %c0_141] : memref<8x16x32xbf16, #tpu.memory_space<vmem>>, vector<1x16x32xbf16>
      %155 = vector.shape_cast %154 : vector<1x16x32xbf16> to vector<16x32xbf16>
      %cst_142 = arith.constant dense<0.000000e+00> : vector<16x32xf32>
      %156 = tpu.matmul %118, %155, %cst_142 {dimension_numbers = #tpu.dot_dimension_numbers<[1], [0], [0], [1], [0, 0, 1, 1], [], []>} : vector<16x16xbf16>, vector<16x32xbf16>, vector<16x32xf32> -> vector<16x32xf32>
      %157 = arith.truncf %156 : vector<16x32xf32> to vector<16x32xbf16>
      %c5_143 = arith.constant 5 : index
      %c0_144 = arith.constant 0 : index
      %c0_145 = arith.constant 0 : index
      %158 = vector.load %arg10[%c5_143, %c0_144, %c0_145] : memref<8x16x32xbf16, #tpu.memory_space<vmem>>, vector<1x16x32xbf16>
      %159 = vector.shape_cast %158 : vector<1x16x32xbf16> to vector<16x32xbf16>
      %160 = vector.shape_cast %157 : vector<16x32xbf16> to vector<1x16x32xbf16>
      tpu.vector_store %arg10[%c5_143, %c0_144, %c0_145], %160 {strides = array<i32>} : memref<8x16x32xbf16, #tpu.memory_space<vmem>>, vector<1x16x32xbf16>,
      %c6_146 = arith.constant 6 : index
      %c0_147 = arith.constant 0 : index
      %c0_148 = arith.constant 0 : index
      %161 = vector.load %arg5[%c6_146, %c0_147, %c0_148] : memref<8x16x32xbf16, #tpu.memory_space<vmem>>, vector<1x16x32xbf16>
      %162 = vector.shape_cast %161 : vector<1x16x32xbf16> to vector<16x32xbf16>
      %cst_149 = arith.constant dense<0.000000e+00> : vector<16x32xf32>
      %163 = tpu.matmul %118, %162, %cst_149 {dimension_numbers = #tpu.dot_dimension_numbers<[1], [0], [0], [1], [0, 0, 1, 1], [], []>} : vector<16x16xbf16>, vector<16x32xbf16>, vector<16x32xf32> -> vector<16x32xf32>
      %164 = arith.truncf %163 : vector<16x32xf32> to vector<16x32xbf16>
      %c6_150 = arith.constant 6 : index
      %c0_151 = arith.constant 0 : index
      %c0_152 = arith.constant 0 : index
      %165 = vector.load %arg10[%c6_150, %c0_151, %c0_152] : memref<8x16x32xbf16, #tpu.memory_space<vmem>>, vector<1x16x32xbf16>
      %166 = vector.shape_cast %165 : vector<1x16x32xbf16> to vector<16x32xbf16>
      %167 = vector.shape_cast %164 : vector<16x32xbf16> to vector<1x16x32xbf16>
      tpu.vector_store %arg10[%c6_150, %c0_151, %c0_152], %167 {strides = array<i32>} : memref<8x16x32xbf16, #tpu.memory_space<vmem>>, vector<1x16x32xbf16>,
      %c7_153 = arith.constant 7 : index
      %c0_154 = arith.constant 0 : index
      %c0_155 = arith.constant 0 : index
      %168 = vector.load %arg5[%c7_153, %c0_154, %c0_155] : memref<8x16x32xbf16, #tpu.memory_space<vmem>>, vector<1x16x32xbf16>
      %169 = vector.shape_cast %168 : vector<1x16x32xbf16> to vector<16x32xbf16>
      %cst_156 = arith.constant dense<0.000000e+00> : vector<16x32xf32>
      %170 = tpu.matmul %118, %169, %cst_156 {dimension_numbers = #tpu.dot_dimension_numbers<[1], [0], [0], [1], [0, 0, 1, 1], [], []>} : vector<16x16xbf16>, vector<16x32xbf16>, vector<16x32xf32> -> vector<16x32xf32>
      %171 = arith.truncf %170 : vector<16x32xf32> to vector<16x32xbf16>
      %c7_157 = arith.constant 7 : index
      %c0_158 = arith.constant 0 : index
      %c0_159 = arith.constant 0 : index
      %172 = vector.load %arg10[%c7_157, %c0_158, %c0_159] : memref<8x16x32xbf16, #tpu.memory_space<vmem>>, vector<1x16x32xbf16>
      %173 = vector.shape_cast %172 : vector<1x16x32xbf16> to vector<16x32xbf16>
      %174 = vector.shape_cast %171 : vector<16x32xbf16> to vector<1x16x32xbf16>
      tpu.vector_store %arg10[%c7_157, %c0_158, %c0_159], %174 {strides = array<i32>} : memref<8x16x32xbf16, #tpu.memory_space<vmem>>, vector<1x16x32xbf16>,
    } else {
    }
    %c0_i32_2 = arith.constant 0 : i32
    %5 = arith.cmpi eq, %arg2, %c0_i32_2 : i32
    %6 = arith.extui %5 : i1 to i32
    %c0_i32_3 = arith.constant 0 : i32
    %7 = arith.cmpi ne, %6, %c0_i32_3 : i32
    scf.if %7 {
      %cst_101 = arith.constant 0.000000e+00 : f32
      %117 = vector.broadcast %cst_101 : f32 to vector<8x16x32xf32>
      %c0_102 = arith.constant 0 : index
      %c0_103 = arith.constant 0 : index
      %c0_104 = arith.constant 0 : index
      %118 = vector.load %arg11[%c0_102, %c0_103, %c0_104] : memref<8x16x32xf32, #tpu.memory_space<vmem>>, vector<8x16x32xf32>
      tpu.vector_store %arg11[%c0_102, %c0_103, %c0_104], %117 {strides = array<i32>} : memref<8x16x32xf32, #tpu.memory_space<vmem>>, vector<8x16x32xf32>,
    } else {
    }
    %c16_i32 = arith.constant 16 : i32
    %8 = arith.muli %arg2, %c16_i32 : i32
    %9 = tpu.assume_multiple %8, 16 : i32
    %c0 = arith.constant 0 : index
    %c0_4 = arith.constant 0 : index
    %c0_5 = arith.constant 0 : index
    %c0_6 = arith.constant 0 : index
    %10 = vector.load %arg3[%c0, %c0_4, %c0_5, %c0_6] : memref<1x8x16x16xf32, #tpu.memory_space<vmem>>, vector<1x1x16x16xf32>
    %11 = vector.shape_cast %10 : vector<1x1x16x16xf32> to vector<16x16xf32>
    %12 = arith.truncf %11 : vector<16x16xf32> to vector<16x16xbf16>
    %c0_7 = arith.constant 0 : index
    %c0_8 = arith.constant 0 : index
    %c0_9 = arith.constant 0 : index
    %13 = vector.load %arg11[%c0_7, %c0_8, %c0_9] : memref<8x16x32xf32, #tpu.memory_space<vmem>>, vector<1x16x32xf32>
    %14 = vector.shape_cast %13 : vector<1x16x32xf32> to vector<16x32xf32>
    %c0_10 = arith.constant 0 : index
    %15 = arith.index_cast %9 : i32 to index
    %c0_11 = arith.constant 0 : index
    %16 = vector.load %arg10[%c0_10, %15, %c0_11] : memref<8x16x32xbf16, #tpu.memory_space<vmem>>, vector<1x16x32xbf16>
    %17 = vector.shape_cast %16 : vector<1x16x32xbf16> to vector<16x32xbf16>
    %cst = arith.constant dense<0.000000e+00> : vector<16x32xf32>
    %18 = tpu.matmul %12, %17, %cst {dimension_numbers = #tpu.dot_dimension_numbers<[1], [0], [0], [1], [0, 0, 1, 1], [], []>} : vector<16x16xbf16>, vector<16x32xbf16>, vector<16x32xf32> -> vector<16x32xf32>
    %19 = arith.addf %14, %18 : vector<16x32xf32>
    %c0_12 = arith.constant 0 : index
    %c0_13 = arith.constant 0 : index
    %c0_14 = arith.constant 0 : index
    %20 = vector.load %arg11[%c0_12, %c0_13, %c0_14] : memref<8x16x32xf32, #tpu.memory_space<vmem>>, vector<1x16x32xf32>
    %21 = vector.shape_cast %20 : vector<1x16x32xf32> to vector<16x32xf32>
    %22 = vector.shape_cast %19 : vector<16x32xf32> to vector<1x16x32xf32>
    tpu.vector_store %arg11[%c0_12, %c0_13, %c0_14], %22 {strides = array<i32>} : memref<8x16x32xf32, #tpu.memory_space<vmem>>, vector<1x16x32xf32>,
    %c0_15 = arith.constant 0 : index
    %c1 = arith.constant 1 : index
    %c0_16 = arith.constant 0 : index
    %c0_17 = arith.constant 0 : index
    %23 = vector.load %arg3[%c0_15, %c1, %c0_16, %c0_17] : memref<1x8x16x16xf32, #tpu.memory_space<vmem>>, vector<1x1x16x16xf32>
    %24 = vector.shape_cast %23 : vector<1x1x16x16xf32> to vector<16x16xf32>
    %25 = arith.truncf %24 : vector<16x16xf32> to vector<16x16xbf16>
    %c1_18 = arith.constant 1 : index
    %c0_19 = arith.constant 0 : index
    %c0_20 = arith.constant 0 : index
    %26 = vector.load %arg11[%c1_18, %c0_19, %c0_20] : memref<8x16x32xf32, #tpu.memory_space<vmem>>, vector<1x16x32xf32>
    %27 = vector.shape_cast %26 : vector<1x16x32xf32> to vector<16x32xf32>
    %c1_21 = arith.constant 1 : index
    %28 = arith.index_cast %9 : i32 to index
    %c0_22 = arith.constant 0 : index
    %29 = vector.load %arg10[%c1_21, %28, %c0_22] : memref<8x16x32xbf16, #tpu.memory_space<vmem>>, vector<1x16x32xbf16>
    %30 = vector.shape_cast %29 : vector<1x16x32xbf16> to vector<16x32xbf16>
    %cst_23 = arith.constant dense<0.000000e+00> : vector<16x32xf32>
    %31 = tpu.matmul %25, %30, %cst_23 {dimension_numbers = #tpu.dot_dimension_numbers<[1], [0], [0], [1], [0, 0, 1, 1], [], []>} : vector<16x16xbf16>, vector<16x32xbf16>, vector<16x32xf32> -> vector<16x32xf32>
    %32 = arith.addf %27, %31 : vector<16x32xf32>
    %c1_24 = arith.constant 1 : index
    %c0_25 = arith.constant 0 : index
    %c0_26 = arith.constant 0 : index
    %33 = vector.load %arg11[%c1_24, %c0_25, %c0_26] : memref<8x16x32xf32, #tpu.memory_space<vmem>>, vector<1x16x32xf32>
    %34 = vector.shape_cast %33 : vector<1x16x32xf32> to vector<16x32xf32>
    %35 = vector.shape_cast %32 : vector<16x32xf32> to vector<1x16x32xf32>
    tpu.vector_store %arg11[%c1_24, %c0_25, %c0_26], %35 {strides = array<i32>} : memref<8x16x32xf32, #tpu.memory_space<vmem>>, vector<1x16x32xf32>,
    %c0_27 = arith.constant 0 : index
    %c2 = arith.constant 2 : index
    %c0_28 = arith.constant 0 : index
    %c0_29 = arith.constant 0 : index
    %36 = vector.load %arg3[%c0_27, %c2, %c0_28, %c0_29] : memref<1x8x16x16xf32, #tpu.memory_space<vmem>>, vector<1x1x16x16xf32>
    %37 = vector.shape_cast %36 : vector<1x1x16x16xf32> to vector<16x16xf32>
    %38 = arith.truncf %37 : vector<16x16xf32> to vector<16x16xbf16>
    %c2_30 = arith.constant 2 : index
    %c0_31 = arith.constant 0 : index
    %c0_32 = arith.constant 0 : index
    %39 = vector.load %arg11[%c2_30, %c0_31, %c0_32] : memref<8x16x32xf32, #tpu.memory_space<vmem>>, vector<1x16x32xf32>
    %40 = vector.shape_cast %39 : vector<1x16x32xf32> to vector<16x32xf32>
    %c2_33 = arith.constant 2 : index
    %41 = arith.index_cast %9 : i32 to index
    %c0_34 = arith.constant 0 : index
    %42 = vector.load %arg10[%c2_33, %41, %c0_34] : memref<8x16x32xbf16, #tpu.memory_space<vmem>>, vector<1x16x32xbf16>
    %43 = vector.shape_cast %42 : vector<1x16x32xbf16> to vector<16x32xbf16>
    %cst_35 = arith.constant dense<0.000000e+00> : vector<16x32xf32>
    %44 = tpu.matmul %38, %43, %cst_35 {dimension_numbers = #tpu.dot_dimension_numbers<[1], [0], [0], [1], [0, 0, 1, 1], [], []>} : vector<16x16xbf16>, vector<16x32xbf16>, vector<16x32xf32> -> vector<16x32xf32>
    %45 = arith.addf %40, %44 : vector<16x32xf32>
    %c2_36 = arith.constant 2 : index
    %c0_37 = arith.constant 0 : index
    %c0_38 = arith.constant 0 : index
    %46 = vector.load %arg11[%c2_36, %c0_37, %c0_38] : memref<8x16x32xf32, #tpu.memory_space<vmem>>, vector<1x16x32xf32>
    %47 = vector.shape_cast %46 : vector<1x16x32xf32> to vector<16x32xf32>
    %48 = vector.shape_cast %45 : vector<16x32xf32> to vector<1x16x32xf32>
    tpu.vector_store %arg11[%c2_36, %c0_37, %c0_38], %48 {strides = array<i32>} : memref<8x16x32xf32, #tpu.memory_space<vmem>>, vector<1x16x32xf32>,
    %c0_39 = arith.constant 0 : index
    %c3 = arith.constant 3 : index
    %c0_40 = arith.constant 0 : index
    %c0_41 = arith.constant 0 : index
    %49 = vector.load %arg3[%c0_39, %c3, %c0_40, %c0_41] : memref<1x8x16x16xf32, #tpu.memory_space<vmem>>, vector<1x1x16x16xf32>
    %50 = vector.shape_cast %49 : vector<1x1x16x16xf32> to vector<16x16xf32>
    %51 = arith.truncf %50 : vector<16x16xf32> to vector<16x16xbf16>
    %c3_42 = arith.constant 3 : index
    %c0_43 = arith.constant 0 : index
    %c0_44 = arith.constant 0 : index
    %52 = vector.load %arg11[%c3_42, %c0_43, %c0_44] : memref<8x16x32xf32, #tpu.memory_space<vmem>>, vector<1x16x32xf32>
    %53 = vector.shape_cast %52 : vector<1x16x32xf32> to vector<16x32xf32>
    %c3_45 = arith.constant 3 : index
    %54 = arith.index_cast %9 : i32 to index
    %c0_46 = arith.constant 0 : index
    %55 = vector.load %arg10[%c3_45, %54, %c0_46] : memref<8x16x32xbf16, #tpu.memory_space<vmem>>, vector<1x16x32xbf16>
    %56 = vector.shape_cast %55 : vector<1x16x32xbf16> to vector<16x32xbf16>
    %cst_47 = arith.constant dense<0.000000e+00> : vector<16x32xf32>
    %57 = tpu.matmul %51, %56, %cst_47 {dimension_numbers = #tpu.dot_dimension_numbers<[1], [0], [0], [1], [0, 0, 1, 1], [], []>} : vector<16x16xbf16>, vector<16x32xbf16>, vector<16x32xf32> -> vector<16x32xf32>
    %58 = arith.addf %53, %57 : vector<16x32xf32>
    %c3_48 = arith.constant 3 : index
    %c0_49 = arith.constant 0 : index
    %c0_50 = arith.constant 0 : index
    %59 = vector.load %arg11[%c3_48, %c0_49, %c0_50] : memref<8x16x32xf32, #tpu.memory_space<vmem>>, vector<1x16x32xf32>
    %60 = vector.shape_cast %59 : vector<1x16x32xf32> to vector<16x32xf32>
    %61 = vector.shape_cast %58 : vector<16x32xf32> to vector<1x16x32xf32>
    tpu.vector_store %arg11[%c3_48, %c0_49, %c0_50], %61 {strides = array<i32>} : memref<8x16x32xf32, #tpu.memory_space<vmem>>, vector<1x16x32xf32>,
    %c0_51 = arith.constant 0 : index
    %c4 = arith.constant 4 : index
    %c0_52 = arith.constant 0 : index
    %c0_53 = arith.constant 0 : index
    %62 = vector.load %arg3[%c0_51, %c4, %c0_52, %c0_53] : memref<1x8x16x16xf32, #tpu.memory_space<vmem>>, vector<1x1x16x16xf32>
    %63 = vector.shape_cast %62 : vector<1x1x16x16xf32> to vector<16x16xf32>
    %64 = arith.truncf %63 : vector<16x16xf32> to vector<16x16xbf16>
    %c4_54 = arith.constant 4 : index
    %c0_55 = arith.constant 0 : index
    %c0_56 = arith.constant 0 : index
    %65 = vector.load %arg11[%c4_54, %c0_55, %c0_56] : memref<8x16x32xf32, #tpu.memory_space<vmem>>, vector<1x16x32xf32>
    %66 = vector.shape_cast %65 : vector<1x16x32xf32> to vector<16x32xf32>
    %c4_57 = arith.constant 4 : index
    %67 = arith.index_cast %9 : i32 to index
    %c0_58 = arith.constant 0 : index
    %68 = vector.load %arg10[%c4_57, %67, %c0_58] : memref<8x16x32xbf16, #tpu.memory_space<vmem>>, vector<1x16x32xbf16>
    %69 = vector.shape_cast %68 : vector<1x16x32xbf16> to vector<16x32xbf16>
    %cst_59 = arith.constant dense<0.000000e+00> : vector<16x32xf32>
    %70 = tpu.matmul %64, %69, %cst_59 {dimension_numbers = #tpu.dot_dimension_numbers<[1], [0], [0], [1], [0, 0, 1, 1], [], []>} : vector<16x16xbf16>, vector<16x32xbf16>, vector<16x32xf32> -> vector<16x32xf32>
    %71 = arith.addf %66, %70 : vector<16x32xf32>
    %c4_60 = arith.constant 4 : index
    %c0_61 = arith.constant 0 : index
    %c0_62 = arith.constant 0 : index
    %72 = vector.load %arg11[%c4_60, %c0_61, %c0_62] : memref<8x16x32xf32, #tpu.memory_space<vmem>>, vector<1x16x32xf32>
    %73 = vector.shape_cast %72 : vector<1x16x32xf32> to vector<16x32xf32>
    %74 = vector.shape_cast %71 : vector<16x32xf32> to vector<1x16x32xf32>
    tpu.vector_store %arg11[%c4_60, %c0_61, %c0_62], %74 {strides = array<i32>} : memref<8x16x32xf32, #tpu.memory_space<vmem>>, vector<1x16x32xf32>,
    %c0_63 = arith.constant 0 : index
    %c5 = arith.constant 5 : index
    %c0_64 = arith.constant 0 : index
    %c0_65 = arith.constant 0 : index
    %75 = vector.load %arg3[%c0_63, %c5, %c0_64, %c0_65] : memref<1x8x16x16xf32, #tpu.memory_space<vmem>>, vector<1x1x16x16xf32>
    %76 = vector.shape_cast %75 : vector<1x1x16x16xf32> to vector<16x16xf32>
    %77 = arith.truncf %76 : vector<16x16xf32> to vector<16x16xbf16>
    %c5_66 = arith.constant 5 : index
    %c0_67 = arith.constant 0 : index
    %c0_68 = arith.constant 0 : index
    %78 = vector.load %arg11[%c5_66, %c0_67, %c0_68] : memref<8x16x32xf32, #tpu.memory_space<vmem>>, vector<1x16x32xf32>
    %79 = vector.shape_cast %78 : vector<1x16x32xf32> to vector<16x32xf32>
    %c5_69 = arith.constant 5 : index
    %80 = arith.index_cast %9 : i32 to index
    %c0_70 = arith.constant 0 : index
    %81 = vector.load %arg10[%c5_69, %80, %c0_70] : memref<8x16x32xbf16, #tpu.memory_space<vmem>>, vector<1x16x32xbf16>
    %82 = vector.shape_cast %81 : vector<1x16x32xbf16> to vector<16x32xbf16>
    %cst_71 = arith.constant dense<0.000000e+00> : vector<16x32xf32>
    %83 = tpu.matmul %77, %82, %cst_71 {dimension_numbers = #tpu.dot_dimension_numbers<[1], [0], [0], [1], [0, 0, 1, 1], [], []>} : vector<16x16xbf16>, vector<16x32xbf16>, vector<16x32xf32> -> vector<16x32xf32>
    %84 = arith.addf %79, %83 : vector<16x32xf32>
    %c5_72 = arith.constant 5 : index
    %c0_73 = arith.constant 0 : index
    %c0_74 = arith.constant 0 : index
    %85 = vector.load %arg11[%c5_72, %c0_73, %c0_74] : memref<8x16x32xf32, #tpu.memory_space<vmem>>, vector<1x16x32xf32>
    %86 = vector.shape_cast %85 : vector<1x16x32xf32> to vector<16x32xf32>
    %87 = vector.shape_cast %84 : vector<16x32xf32> to vector<1x16x32xf32>
    tpu.vector_store %arg11[%c5_72, %c0_73, %c0_74], %87 {strides = array<i32>} : memref<8x16x32xf32, #tpu.memory_space<vmem>>, vector<1x16x32xf32>,
    %c0_75 = arith.constant 0 : index
    %c6 = arith.constant 6 : index
    %c0_76 = arith.constant 0 : index
    %c0_77 = arith.constant 0 : index
    %88 = vector.load %arg3[%c0_75, %c6, %c0_76, %c0_77] : memref<1x8x16x16xf32, #tpu.memory_space<vmem>>, vector<1x1x16x16xf32>
    %89 = vector.shape_cast %88 : vector<1x1x16x16xf32> to vector<16x16xf32>
    %90 = arith.truncf %89 : vector<16x16xf32> to vector<16x16xbf16>
    %c6_78 = arith.constant 6 : index
    %c0_79 = arith.constant 0 : index
    %c0_80 = arith.constant 0 : index
    %91 = vector.load %arg11[%c6_78, %c0_79, %c0_80] : memref<8x16x32xf32, #tpu.memory_space<vmem>>, vector<1x16x32xf32>
    %92 = vector.shape_cast %91 : vector<1x16x32xf32> to vector<16x32xf32>
    %c6_81 = arith.constant 6 : index
    %93 = arith.index_cast %9 : i32 to index
    %c0_82 = arith.constant 0 : index
    %94 = vector.load %arg10[%c6_81, %93, %c0_82] : memref<8x16x32xbf16, #tpu.memory_space<vmem>>, vector<1x16x32xbf16>
    %95 = vector.shape_cast %94 : vector<1x16x32xbf16> to vector<16x32xbf16>
    %cst_83 = arith.constant dense<0.000000e+00> : vector<16x32xf32>
    %96 = tpu.matmul %90, %95, %cst_83 {dimension_numbers = #tpu.dot_dimension_numbers<[1], [0], [0], [1], [0, 0, 1, 1], [], []>} : vector<16x16xbf16>, vector<16x32xbf16>, vector<16x32xf32> -> vector<16x32xf32>
    %97 = arith.addf %92, %96 : vector<16x32xf32>
    %c6_84 = arith.constant 6 : index
    %c0_85 = arith.constant 0 : index
    %c0_86 = arith.constant 0 : index
    %98 = vector.load %arg11[%c6_84, %c0_85, %c0_86] : memref<8x16x32xf32, #tpu.memory_space<vmem>>, vector<1x16x32xf32>
    %99 = vector.shape_cast %98 : vector<1x16x32xf32> to vector<16x32xf32>
    %100 = vector.shape_cast %97 : vector<16x32xf32> to vector<1x16x32xf32>
    tpu.vector_store %arg11[%c6_84, %c0_85, %c0_86], %100 {strides = array<i32>} : memref<8x16x32xf32, #tpu.memory_space<vmem>>, vector<1x16x32xf32>,
    %c0_87 = arith.constant 0 : index
    %c7 = arith.constant 7 : index
    %c0_88 = arith.constant 0 : index
    %c0_89 = arith.constant 0 : index
    %101 = vector.load %arg3[%c0_87, %c7, %c0_88, %c0_89] : memref<1x8x16x16xf32, #tpu.memory_space<vmem>>, vector<1x1x16x16xf32>
    %102 = vector.shape_cast %101 : vector<1x1x16x16xf32> to vector<16x16xf32>
    %103 = arith.truncf %102 : vector<16x16xf32> to vector<16x16xbf16>
    %c7_90 = arith.constant 7 : index
    %c0_91 = arith.constant 0 : index
    %c0_92 = arith.constant 0 : index
    %104 = vector.load %arg11[%c7_90, %c0_91, %c0_92] : memref<8x16x32xf32, #tpu.memory_space<vmem>>, vector<1x16x32xf32>
    %105 = vector.shape_cast %104 : vector<1x16x32xf32> to vector<16x32xf32>
    %c7_93 = arith.constant 7 : index
    %106 = arith.index_cast %9 : i32 to index
    %c0_94 = arith.constant 0 : index
    %107 = vector.load %arg10[%c7_93, %106, %c0_94] : memref<8x16x32xbf16, #tpu.memory_space<vmem>>, vector<1x16x32xbf16>
    %108 = vector.shape_cast %107 : vector<1x16x32xbf16> to vector<16x32xbf16>
    %cst_95 = arith.constant dense<0.000000e+00> : vector<16x32xf32>
    %109 = tpu.matmul %103, %108, %cst_95 {dimension_numbers = #tpu.dot_dimension_numbers<[1], [0], [0], [1], [0, 0, 1, 1], [], []>} : vector<16x16xbf16>, vector<16x32xbf16>, vector<16x32xf32> -> vector<16x32xf32>
    %110 = arith.addf %105, %109 : vector<16x32xf32>
    %c7_96 = arith.constant 7 : index
    %c0_97 = arith.constant 0 : index
    %c0_98 = arith.constant 0 : index
    %111 = vector.load %arg11[%c7_96, %c0_97, %c0_98] : memref<8x16x32xf32, #tpu.memory_space<vmem>>, vector<1x16x32xf32>
    %112 = vector.shape_cast %111 : vector<1x16x32xf32> to vector<16x32xf32>
    %113 = vector.shape_cast %110 : vector<16x32xf32> to vector<1x16x32xf32>
    tpu.vector_store %arg11[%c7_96, %c0_97, %c0_98], %113 {strides = array<i32>} : memref<8x16x32xf32, #tpu.memory_space<vmem>>, vector<1x16x32xf32>,
    %c0_i32_99 = arith.constant 0 : i32
    %114 = arith.cmpi eq, %arg2, %c0_i32_99 : i32
    %115 = arith.extui %114 : i1 to i32
    %c0_i32_100 = arith.constant 0 : i32
    %116 = arith.cmpi ne, %115, %c0_i32_100 : i32
    scf.if %116 {
      %cst_101 = arith.constant 0.000000e+00 : f32
      %117 = vector.broadcast %cst_101 : f32 to vector<16x32xf32>
      %c0_102 = arith.constant 0 : index
      %c0_103 = arith.constant 0 : index
      %c0_104 = arith.constant 0 : index
      %118 = vector.load %arg11[%c0_102, %c0_103, %c0_104] : memref<8x16x32xf32, #tpu.memory_space<vmem>>, vector<1x16x32xf32>
      %119 = vector.shape_cast %118 : vector<1x16x32xf32> to vector<16x32xf32>
      %c0_105 = arith.constant 0 : index
      %c0_106 = arith.constant 0 : index
      %c0_107 = arith.constant 0 : index
      %120 = vector.load %arg6[%c0_105, %c0_106, %c0_107] : memref<8x1x32xf32, #tpu.memory_space<vmem>>, vector<1x1x32xf32>
      %121 = vector.shape_cast %120 : vector<1x1x32xf32> to vector<1x32xf32>
      %122 = vector.broadcast %121 : vector<1x32xf32> to vector<16x32xf32>
      %123 = arith.addf %119, %122 : vector<16x32xf32>
      %cst_108 = arith.constant 0.000000e+00 : f32
      %124 = vector.broadcast %cst_108 : f32 to vector<16x32xf32>
      %125 = arith.maximumf %123, %124 : vector<16x32xf32>
      %126 = arith.addf %117, %125 : vector<16x32xf32>
      %c1_109 = arith.constant 1 : index
      %c0_110 = arith.constant 0 : index
      %c0_111 = arith.constant 0 : index
      %127 = vector.load %arg11[%c1_109, %c0_110, %c0_111] : memref<8x16x32xf32, #tpu.memory_space<vmem>>, vector<1x16x32xf32>
      %128 = vector.shape_cast %127 : vector<1x16x32xf32> to vector<16x32xf32>
      %c1_112 = arith.constant 1 : index
      %c0_113 = arith.constant 0 : index
      %c0_114 = arith.constant 0 : index
      %129 = vector.load %arg6[%c1_112, %c0_113, %c0_114] : memref<8x1x32xf32, #tpu.memory_space<vmem>>, vector<1x1x32xf32>
      %130 = vector.shape_cast %129 : vector<1x1x32xf32> to vector<1x32xf32>
      %131 = vector.broadcast %130 : vector<1x32xf32> to vector<16x32xf32>
      %132 = arith.addf %128, %131 : vector<16x32xf32>
      %cst_115 = arith.constant 0.000000e+00 : f32
      %133 = vector.broadcast %cst_115 : f32 to vector<16x32xf32>
      %134 = arith.maximumf %132, %133 : vector<16x32xf32>
      %135 = arith.addf %126, %134 : vector<16x32xf32>
      %c2_116 = arith.constant 2 : index
      %c0_117 = arith.constant 0 : index
      %c0_118 = arith.constant 0 : index
      %136 = vector.load %arg11[%c2_116, %c0_117, %c0_118] : memref<8x16x32xf32, #tpu.memory_space<vmem>>, vector<1x16x32xf32>
      %137 = vector.shape_cast %136 : vector<1x16x32xf32> to vector<16x32xf32>
      %c2_119 = arith.constant 2 : index
      %c0_120 = arith.constant 0 : index
      %c0_121 = arith.constant 0 : index
      %138 = vector.load %arg6[%c2_119, %c0_120, %c0_121] : memref<8x1x32xf32, #tpu.memory_space<vmem>>, vector<1x1x32xf32>
      %139 = vector.shape_cast %138 : vector<1x1x32xf32> to vector<1x32xf32>
      %140 = vector.broadcast %139 : vector<1x32xf32> to vector<16x32xf32>
      %141 = arith.addf %137, %140 : vector<16x32xf32>
      %cst_122 = arith.constant 0.000000e+00 : f32
      %142 = vector.broadcast %cst_122 : f32 to vector<16x32xf32>
      %143 = arith.maximumf %141, %142 : vector<16x32xf32>
      %144 = arith.addf %135, %143 : vector<16x32xf32>
      %c3_123 = arith.constant 3 : index
      %c0_124 = arith.constant 0 : index
      %c0_125 = arith.constant 0 : index
      %145 = vector.load %arg11[%c3_123, %c0_124, %c0_125] : memref<8x16x32xf32, #tpu.memory_space<vmem>>, vector<1x16x32xf32>
      %146 = vector.shape_cast %145 : vector<1x16x32xf32> to vector<16x32xf32>
      %c3_126 = arith.constant 3 : index
      %c0_127 = arith.constant 0 : index
      %c0_128 = arith.constant 0 : index
      %147 = vector.load %arg6[%c3_126, %c0_127, %c0_128] : memref<8x1x32xf32, #tpu.memory_space<vmem>>, vector<1x1x32xf32>
      %148 = vector.shape_cast %147 : vector<1x1x32xf32> to vector<1x32xf32>
      %149 = vector.broadcast %148 : vector<1x32xf32> to vector<16x32xf32>
      %150 = arith.addf %146, %149 : vector<16x32xf32>
      %cst_129 = arith.constant 0.000000e+00 : f32
      %151 = vector.broadcast %cst_129 : f32 to vector<16x32xf32>
      %152 = arith.maximumf %150, %151 : vector<16x32xf32>
      %153 = arith.addf %144, %152 : vector<16x32xf32>
      %c4_130 = arith.constant 4 : index
      %c0_131 = arith.constant 0 : index
      %c0_132 = arith.constant 0 : index
      %154 = vector.load %arg11[%c4_130, %c0_131, %c0_132] : memref<8x16x32xf32, #tpu.memory_space<vmem>>, vector<1x16x32xf32>
      %155 = vector.shape_cast %154 : vector<1x16x32xf32> to vector<16x32xf32>
      %c4_133 = arith.constant 4 : index
      %c0_134 = arith.constant 0 : index
      %c0_135 = arith.constant 0 : index
      %156 = vector.load %arg6[%c4_133, %c0_134, %c0_135] : memref<8x1x32xf32, #tpu.memory_space<vmem>>, vector<1x1x32xf32>
      %157 = vector.shape_cast %156 : vector<1x1x32xf32> to vector<1x32xf32>
      %158 = vector.broadcast %157 : vector<1x32xf32> to vector<16x32xf32>
      %159 = arith.addf %155, %158 : vector<16x32xf32>
      %cst_136 = arith.constant 0.000000e+00 : f32
      %160 = vector.broadcast %cst_136 : f32 to vector<16x32xf32>
      %161 = arith.maximumf %159, %160 : vector<16x32xf32>
      %162 = arith.addf %153, %161 : vector<16x32xf32>
      %c5_137 = arith.constant 5 : index
      %c0_138 = arith.constant 0 : index
      %c0_139 = arith.constant 0 : index
      %163 = vector.load %arg11[%c5_137, %c0_138, %c0_139] : memref<8x16x32xf32, #tpu.memory_space<vmem>>, vector<1x16x32xf32>
      %164 = vector.shape_cast %163 : vector<1x16x32xf32> to vector<16x32xf32>
      %c5_140 = arith.constant 5 : index
      %c0_141 = arith.constant 0 : index
      %c0_142 = arith.constant 0 : index
      %165 = vector.load %arg6[%c5_140, %c0_141, %c0_142] : memref<8x1x32xf32, #tpu.memory_space<vmem>>, vector<1x1x32xf32>
      %166 = vector.shape_cast %165 : vector<1x1x32xf32> to vector<1x32xf32>
      %167 = vector.broadcast %166 : vector<1x32xf32> to vector<16x32xf32>
      %168 = arith.addf %164, %167 : vector<16x32xf32>
      %cst_143 = arith.constant 0.000000e+00 : f32
      %169 = vector.broadcast %cst_143 : f32 to vector<16x32xf32>
      %170 = arith.maximumf %168, %169 : vector<16x32xf32>
      %171 = arith.addf %162, %170 : vector<16x32xf32>
      %c6_144 = arith.constant 6 : index
      %c0_145 = arith.constant 0 : index
      %c0_146 = arith.constant 0 : index
      %172 = vector.load %arg11[%c6_144, %c0_145, %c0_146] : memref<8x16x32xf32, #tpu.memory_space<vmem>>, vector<1x16x32xf32>
      %173 = vector.shape_cast %172 : vector<1x16x32xf32> to vector<16x32xf32>
      %c6_147 = arith.constant 6 : index
      %c0_148 = arith.constant 0 : index
      %c0_149 = arith.constant 0 : index
      %174 = vector.load %arg6[%c6_147, %c0_148, %c0_149] : memref<8x1x32xf32, #tpu.memory_space<vmem>>, vector<1x1x32xf32>
      %175 = vector.shape_cast %174 : vector<1x1x32xf32> to vector<1x32xf32>
      %176 = vector.broadcast %175 : vector<1x32xf32> to vector<16x32xf32>
      %177 = arith.addf %173, %176 : vector<16x32xf32>
      %cst_150 = arith.constant 0.000000e+00 : f32
      %178 = vector.broadcast %cst_150 : f32 to vector<16x32xf32>
      %179 = arith.maximumf %177, %178 : vector<16x32xf32>
      %180 = arith.addf %171, %179 : vector<16x32xf32>
      %c7_151 = arith.constant 7 : index
      %c0_152 = arith.constant 0 : index
      %c0_153 = arith.constant 0 : index
      %181 = vector.load %arg11[%c7_151, %c0_152, %c0_153] : memref<8x16x32xf32, #tpu.memory_space<vmem>>, vector<1x16x32xf32>
      %182 = vector.shape_cast %181 : vector<1x16x32xf32> to vector<16x32xf32>
      %c7_154 = arith.constant 7 : index
      %c0_155 = arith.constant 0 : index
      %c0_156 = arith.constant 0 : index
      %183 = vector.load %arg6[%c7_154, %c0_155, %c0_156] : memref<8x1x32xf32, #tpu.memory_space<vmem>>, vector<1x1x32xf32>
      %184 = vector.shape_cast %183 : vector<1x1x32xf32> to vector<1x32xf32>
      %185 = vector.broadcast %184 : vector<1x32xf32> to vector<16x32xf32>
      %186 = arith.addf %182, %185 : vector<16x32xf32>
      %cst_157 = arith.constant 0.000000e+00 : f32
      %187 = vector.broadcast %cst_157 : f32 to vector<16x32xf32>
      %188 = arith.maximumf %186, %187 : vector<16x32xf32>
      %189 = arith.addf %180, %188 : vector<16x32xf32>
      %190 = arith.truncf %189 : vector<16x32xf32> to vector<16x32xbf16>
      %c0_158 = arith.constant 0 : index
      %c0_159 = arith.constant 0 : index
      %191 = vector.load %arg7[%c0_158, %c0_159] : memref<32x32xbf16, #tpu.memory_space<vmem>>, vector<32x32xbf16>
      %cst_160 = arith.constant dense<0.000000e+00> : vector<16x32xf32>
      %192 = tpu.matmul %190, %191, %cst_160 {dimension_numbers = #tpu.dot_dimension_numbers<[1], [0], [0], [1], [0, 0, 1, 1], [], []>} : vector<16x32xbf16>, vector<32x32xbf16>, vector<16x32xf32> -> vector<16x32xf32>
      %c0_161 = arith.constant 0 : index
      %c0_162 = arith.constant 0 : index
      %193 = vector.load %arg8[%c0_161, %c0_162] : memref<1x32xf32, #tpu.memory_space<vmem>>, vector<1x32xf32>
      %194 = vector.broadcast %193 : vector<1x32xf32> to vector<16x32xf32>
      %195 = arith.addf %192, %194 : vector<16x32xf32>
      %c0_163 = arith.constant 0 : index
      %c0_164 = arith.constant 0 : index
      %c0_165 = arith.constant 0 : index
      %196 = vector.load %arg9[%c0_163, %c0_164, %c0_165] : memref<1x16x32xf32, #tpu.memory_space<vmem>>, vector<1x16x32xf32>
      %197 = vector.shape_cast %196 : vector<1x16x32xf32> to vector<16x32xf32>
      %198 = vector.shape_cast %195 : vector<16x32xf32> to vector<1x16x32xf32>
      tpu.vector_store %arg9[%c0_163, %c0_164, %c0_165], %198 {strides = array<i32>} : memref<1x16x32xf32, #tpu.memory_space<vmem>>, vector<1x16x32xf32>,
    } else {
    }
    return
  }
  func.func @transform_0(%arg0: i32, %arg1: i32, %arg2: i32) -> (i32, i32, i32, i32) {
    %c0_i32 = arith.constant 0 : i32
    %c0_i32_0 = arith.constant 0 : i32
    return %arg0, %c0_i32, %arg1, %arg2 : i32, i32, i32, i32
  }
  func.func @transform_1(%arg0: i32, %arg1: i32, %arg2: i32) -> (i32, i32, i32) {
    %c0_i32 = arith.constant 0 : i32
    %c0_i32_0 = arith.constant 0 : i32
    %c0_i32_1 = arith.constant 0 : i32
    return %arg0, %c0_i32, %c0_i32_0 : i32, i32, i32
  }
  func.func @transform_2(%arg0: i32, %arg1: i32, %arg2: i32) -> (i32, i32, i32) {
    %c0_i32 = arith.constant 0 : i32
    %c0_i32_0 = arith.constant 0 : i32
    %c0_i32_1 = arith.constant 0 : i32
    %c0_i32_2 = arith.constant 0 : i32
    return %c0_i32, %c0_i32_0, %c0_i32_1 : i32, i32, i32
  }
  func.func @transform_3(%arg0: i32, %arg1: i32, %arg2: i32) -> (i32, i32, i32) {
    %c0_i32 = arith.constant 0 : i32
    %c0_i32_0 = arith.constant 0 : i32
    %c0_i32_1 = arith.constant 0 : i32
    %c0_i32_2 = arith.constant 0 : i32
    return %c0_i32, %c0_i32_0, %c0_i32_1 : i32, i32, i32
  }
  func.func @transform_4(%arg0: i32, %arg1: i32, %arg2: i32) -> (i32, i32) {
    %c0_i32 = arith.constant 0 : i32
    %c0_i32_0 = arith.constant 0 : i32
    %c0_i32_1 = arith.constant 0 : i32
    return %c0_i32, %c0_i32_0 : i32, i32
  }
  func.func @transform_5(%arg0: i32, %arg1: i32, %arg2: i32) -> (i32, i32) {
    %c0_i32 = arith.constant 0 : i32
    %c0_i32_0 = arith.constant 0 : i32
    %c0_i32_1 = arith.constant 0 : i32
    return %c0_i32, %c0_i32_0 : i32, i32
  }
  func.func @transform_6(%arg0: i32, %arg1: i32, %arg2: i32) -> (i32, i32, i32) {
    %c0_i32 = arith.constant 0 : i32
    %c0_i32_0 = arith.constant 0 : i32
    return %arg0, %arg1, %c0_i32 : i32, i32, i32
  }
}

</mosaic_0001>

<llo_original>
// kernel: lognet_conv_layer.1
$region0: #{lognet_conv_layer.1}
  #allocation0 [shape = 'u32[]', space=smem, size = 0x4, offset = 0x4, fixed_abs, tag = 'smem constant byte address 0x4 - core index']
  #allocation1 [shape = 'u32[144,128]{1,0:T(1,128)}', space=vmem, size = 0x12000, scoped, tag = 'internal scratch']
  #allocation2 [shape = 'bf16[8,16,32]{2,1,0:T(8,128)(2,1)}', space=vmem, size = 0x8000, scoped, tag = 'scratch operand']
  #allocation3 [shape = 'f32[8,16,32]{2,1,0:T(8,128)}', space=vmem, size = 0x10000, scoped, tag = 'scratch operand']
  %s0 = inlined_call_operand.vmem [shape: f32[2,8,16,16], index: 0, kind: input, shape index: {}]
  %s1 = inlined_call_operand.vmem [shape: bf16[2,16,16], index: 1, kind: input, shape index: {}]
  %s2 = inlined_call_operand.vmem [shape: bf16[8,16,32], index: 2, kind: input, shape index: {}]
  %s3 = inlined_call_operand.vmem [shape: f32[8,1,32], index: 3, kind: input, shape index: {}]
  %s4 = inlined_call_operand.vmem [shape: bf16[32,32], index: 4, kind: input, shape index: {}]
  %s5 = inlined_call_operand.vmem [shape: f32[1,32], index: 5, kind: input, shape index: {}]
  %s6 = inlined_call_operand.hbm [shape: f32[2,16,32], index: 6, kind: output, shape index: {}]
  %s7 = sld [smem:[#allocation0]]
  $region69: #{lognet_conv_layer.1} parent=0
    _
  %s9 = ssub.s32 1, %s7
  %s10 = scalar_select 0, %s9, %s7
  $region1: #{lognet_conv_layer.1} parent=0
    #allocation4 [shape = 'u8[16384]{0}', space=vmem, size = 0x4000, scoped, tag = 'output window, operand 0']
    #allocation5 [shape = 's32[2]{0}', space=sflag, size = 0x8, scoped, tag = 'scoped memory for lognet_conv_layer.1']
    %11 = vsyncpa [#allocation5], 0
    %s12 = scalar_lea.sflag [#allocation5], 1
    %13 = vsyncpa %s12, 0
    loop: start=0, step=1, limit=4
    $region2: #{lognet_conv_layer.1} parent=1 // loop_pre_header
      _
    $region3: #{lognet_conv_layer.1} parent=1 // loop_header
      %s15 = sphi 0, %s19
      %p16 = scmp.ge.s32.totalorder %s15, 4
      %s22 = sphi 0, %s41
      %s23 = sphi 0, %s37
      %s24 = sphi 0, %s33
      %s25 = sphi 0, %s22
      %s26 = sphi 0, %s23
      %s27 = sphi 0, %s24
      %s28 = sphi 0, %s25
      %s29 = sphi 0, %s26
      %s30 = sphi 0, %s27
      %s48 = sphi 0, %s50
      %s51 = sphi 0, %s48
      %s52 = sphi 0, %s51
      %s68 = sphi 0, %s52
      %s74 = sphi 0, %s76
      %s77 = sphi 0, %s74
      %s78 = sphi 0, %s77
      %s94 = sphi 0, %s78
      %s98 = sphi 0, %s98
      %s100 = sphi 0, %s98
      %s101 = sphi 0, %s100
      %s115 = sphi 0, %s101
      %s119 = sphi 0, %s119
      %s121 = sphi 0, %s119
      %s122 = sphi 0, %s121
      %s136 = sphi 0, %s122
      %s140 = sphi 0, %s140
      %s142 = sphi 0, %s140
      %s143 = sphi 0, %s142
      %s157 = sphi 0, %s143
      %s161 = sphi 0, %s161
      %s163 = sphi 0, %s161
      %s164 = sphi 0, %s163
      %s178 = sphi 0, %s164
      %s186 = sphi 0, %s188
      %s189 = sphi 0, %s186
      %s190 = sphi 0, %s189
      %s206 = sphi 0, %s190
    $region4: #{lognet_conv_layer.1} parent=1 // loop_header_branch
      %18 = sbr.rel (%p16) target = $region8
    $region5: #{lognet_conv_layer.1} parent=1 // loop_body
      %s20 = ssub.s32 %s15, 1
      %s21 = ssub.s32 %s15, 2
      %s31 = sadd.s32 1, %s24
      %p32 = scmp.ge.s32.totalorder %s31, 1
      %s33 = scalar_select %p32, 0, %s31
      %s34 = sadd.s32 1, %s23
      %s35 = scalar_select %p32, %s34, %s23
      %p36 = scmp.ge.s32.totalorder %s35, 1
      %s37 = scalar_select %p36, 0, %s35
      %s38 = sadd.s32 1, %s22
      %s39 = scalar_select %p36, %s38, %s22
      %p40 = scmp.ge.s32.totalorder %s39, 2
      %s41 = scalar_select %p40, 0, %s39
      %s42 = ssub.s32 %s22, %s41
      %s43 = ssub.s32 %s23, %s37
      %s44 = sor.u32 %s42, %s43
      %s45 = ssub.s32 %s24, %s33
      %s46 = sor.u32 %s44, %s45
      %p47 = scmp.eq.s32.totalorder %s46, 0
      %s49 = sadd.s32 %s48, 1
      %s50 = scalar_select %p47, %s48, %s49
      %p53 = pneg %p47
      %p54 = scmp.eq.s32.totalorder %s15, 1
      %p55 = por %p53, %p54
      %p56 = scmp.ne.s32.totalorder %s48, %s51
      %p57 = scmp.eq.s32.totalorder %s15, 0
      %p58 = por %p56, %p57
      %p59 = scmp.ne.s32.totalorder %s48, %s51
      %p60 = scmp.eq.s32.totalorder %s20, 1
      %p61 = por %p59, %p60
      %p62 = scmp.ne.s32.totalorder %s51, %s52
      %p63 = scmp.eq.s32.totalorder %s20, 0
      %p64 = por %p62, %p63
      %p65 = scmp.ne.s32.totalorder %s51, %s52
      %p66 = scmp.eq.s32.totalorder %s21, 1
      %p67 = por %p65, %p66
      %p69 = scmp.ne.s32.totalorder %s52, %s68
      %p70 = scmp.eq.s32.totalorder %s21, 0
      %p71 = por %p69, %p70
      %s72 = ssub.s32 %s22, %s41
      %p73 = scmp.eq.s32.totalorder %s72, 0
      %s75 = sadd.s32 %s74, 1
      %s76 = scalar_select %p73, %s74, %s75
      %p79 = pneg %p73
      %p80 = scmp.eq.s32.totalorder %s15, 1
      %p81 = por %p79, %p80
      %p82 = scmp.ne.s32.totalorder %s74, %s77
      %p83 = scmp.eq.s32.totalorder %s15, 0
      %p84 = por %p82, %p83
      %p85 = scmp.ne.s32.totalorder %s74, %s77
      %p86 = scmp.eq.s32.totalorder %s20, 1
      %p87 = por %p85, %p86
      %p88 = scmp.ne.s32.totalorder %s77, %s78
      %p89 = scmp.eq.s32.totalorder %s20, 0
      %p90 = por %p88, %p89
      %p91 = scmp.ne.s32.totalorder %s77, %s78
      %p92 = scmp.eq.s32.totalorder %s21, 1
      %p93 = por %p91, %p92
      %p95 = scmp.ne.s32.totalorder %s78, %s94
      %p96 = scmp.eq.s32.totalorder %s21, 0
      %p97 = por %p95, %p96
      %s99 = sadd.s32 %s98, 1
      %p102 = scmp.eq.s32.totalorder %s15, 1
      %p103 = scmp.ne.s32.totalorder %s98, %s100
      %p104 = scmp.eq.s32.totalorder %s15, 0
      %p105 = por %p103, %p104
      %p106 = scmp.ne.s32.totalorder %s98, %s100
      %p107 = scmp.eq.s32.totalorder %s20, 1
      %p108 = por %p106, %p107
      %p109 = scmp.ne.s32.totalorder %s100, %s101
      %p110 = scmp.eq.s32.totalorder %s20, 0
      %p111 = por %p109, %p110
      %p112 = scmp.ne.s32.totalorder %s100, %s101
      %p113 = scmp.eq.s32.totalorder %s21, 1
      %p114 = por %p112, %p113
      %p116 = scmp.ne.s32.totalorder %s101, %s115
      %p117 = scmp.eq.s32.totalorder %s21, 0
      %p118 = por %p116, %p117
      %s120 = sadd.s32 %s119, 1
      %p123 = scmp.eq.s32.totalorder %s15, 1
      %p124 = scmp.ne.s32.totalorder %s119, %s121
      %p125 = scmp.eq.s32.totalorder %s15, 0
      %p126 = por %p124, %p125
      %p127 = scmp.ne.s32.totalorder %s119, %s121
      %p128 = scmp.eq.s32.totalorder %s20, 1
      %p129 = por %p127, %p128
      %p130 = scmp.ne.s32.totalorder %s121, %s122
      %p131 = scmp.eq.s32.totalorder %s20, 0
      %p132 = por %p130, %p131
      %p133 = scmp.ne.s32.totalorder %s121, %s122
      %p134 = scmp.eq.s32.totalorder %s21, 1
      %p135 = por %p133, %p134
      %p137 = scmp.ne.s32.totalorder %s122, %s136
      %p138 = scmp.eq.s32.totalorder %s21, 0
      %p139 = por %p137, %p138
      %s141 = sadd.s32 %s140, 1
      %p144 = scmp.eq.s32.totalorder %s15, 1
      %p145 = scmp.ne.s32.totalorder %s140, %s142
      %p146 = scmp.eq.s32.totalorder %s15, 0
      %p147 = por %p145, %p146
      %p148 = scmp.ne.s32.totalorder %s140, %s142
      %p149 = scmp.eq.s32.totalorder %s20, 1
      %p150 = por %p148, %p149
      %p151 = scmp.ne.s32.totalorder %s142, %s143
      %p152 = scmp.eq.s32.totalorder %s20, 0
      %p153 = por %p151, %p152
      %p154 = scmp.ne.s32.totalorder %s142, %s143
      %p155 = scmp.eq.s32.totalorder %s21, 1
      %p156 = por %p154, %p155
      %p158 = scmp.ne.s32.totalorder %s143, %s157
      %p159 = scmp.eq.s32.totalorder %s21, 0
      %p160 = por %p158, %p159
      %s162 = sadd.s32 %s161, 1
      %p165 = scmp.eq.s32.totalorder %s15, 1
      %p166 = scmp.ne.s32.totalorder %s161, %s163
      %p167 = scmp.eq.s32.totalorder %s15, 0
      %p168 = por %p166, %p167
      %p169 = scmp.ne.s32.totalorder %s161, %s163
      %p170 = scmp.eq.s32.totalorder %s20, 1
      %p171 = por %p169, %p170
      %p172 = scmp.ne.s32.totalorder %s163, %s164
      %p173 = scmp.eq.s32.totalorder %s20, 0
      %p174 = por %p172, %p173
      %p175 = scmp.ne.s32.totalorder %s163, %s164
      %p176 = scmp.eq.s32.totalorder %s21, 1
      %p177 = por %p175, %p176
      %p179 = scmp.ne.s32.totalorder %s164, %s178
      %p180 = scmp.eq.s32.totalorder %s21, 0
      %p181 = por %p179, %p180
      %s182 = ssub.s32 %s22, %s41
      %s183 = ssub.s32 %s23, %s37
      %s184 = sor.u32 %s182, %s183
      %p185 = scmp.eq.s32.totalorder %s184, 0
      %s187 = sadd.s32 %s186, 1
      %s188 = scalar_select %p185, %s186, %s187
      %p191 = pneg %p185
      %p192 = scmp.eq.s32.totalorder %s15, 1
      %p193 = por %p191, %p192
      %p194 = scmp.ne.s32.totalorder %s186, %s189
      %p195 = scmp.eq.s32.totalorder %s15, 0
      %p196 = por %p194, %p195
      %p197 = scmp.ne.s32.totalorder %s186, %s189
      %p198 = scmp.eq.s32.totalorder %s20, 1
      %p199 = por %p197, %p198
      %p200 = scmp.ne.s32.totalorder %s189, %s190
      %p201 = scmp.eq.s32.totalorder %s20, 0
      %p202 = por %p200, %p201
      %p203 = scmp.ne.s32.totalorder %s189, %s190
      %p204 = scmp.eq.s32.totalorder %s21, 1
      %p205 = por %p203, %p204
      %p207 = scmp.ne.s32.totalorder %s190, %s206
      %p208 = scmp.eq.s32.totalorder %s21, 0
      %p209 = por %p207, %p208
      %p210 = scmp.le.s32.totalorder 1, %s15
      %p211 = scmp.lt.s32.totalorder %s15, 3
      %p212 = pnand %p210, %p211
      %p213 = pneg %p212
      // Predicated region
      $region9: #{lognet_conv_layer.1} parent=5 // pred_check
        _
      $region10: #{lognet_conv_layer.1} parent=5 // pred_check_branch
        %215 = sbr.rel (%p212) target = $region12
      $region11: #{lognet_conv_layer.1} parent=5 // pred_region
        %s216 = ssub.s32 %s15, 1
        // Predicated region
        $region13: #{lognet_conv_layer.1} parent=11 // pred_check
          %p217 = pneg %p111
        $region14: #{lognet_conv_layer.1} parent=11 // pred_check_branch
          %219 = sbr.rel (%p217) target = $region16
        $region15: #{lognet_conv_layer.1} parent=11 // pred_region
          _
        $region16: #{lognet_conv_layer.1} parent=11 // pred_fallthru
          _
        // Predicated region
        $region17: #{lognet_conv_layer.1} parent=11 // pred_check
          %p220 = pneg %p132
        $region18: #{lognet_conv_layer.1} parent=11 // pred_check_branch
          %222 = sbr.rel (%p220) target = $region20
        $region19: #{lognet_conv_layer.1} parent=11 // pred_region
          _
        $region20: #{lognet_conv_layer.1} parent=11 // pred_fallthru
          _
        // Predicated region
        $region21: #{lognet_conv_layer.1} parent=11 // pred_check
          %p223 = pneg %p153
        $region22: #{lognet_conv_layer.1} parent=11 // pred_check_branch
          %225 = sbr.rel (%p223) target = $region24
        $region23: #{lognet_conv_layer.1} parent=11 // pred_region
          _
        $region24: #{lognet_conv_layer.1} parent=11 // pred_fallthru
          _
        // Predicated region
        $region25: #{lognet_conv_layer.1} parent=11 // pred_check
          %p226 = pneg %p174
        $region26: #{lognet_conv_layer.1} parent=11 // pred_check_branch
          %228 = sbr.rel (%p226) target = $region28
        $region27: #{lognet_conv_layer.1} parent=11 // pred_region
          _
        $region28: #{lognet_conv_layer.1} parent=11 // pred_fallthru
          _
      $region12: #{lognet_conv_layer.1} parent=5 // pred_fallthru
        _
      %p229 = scmp.lt.s32.totalorder %s15, 2
      // Predicated region
      $region29: #{lognet_conv_layer.1} parent=5 // pred_check
        %p230 = pneg %p229
      $region30: #{lognet_conv_layer.1} parent=5 // pred_check_branch
        %232 = sbr.rel (%p230) target = $region32
      $region31: #{lognet_conv_layer.1} parent=5 // pred_region
        // Predicated region
        $region33: #{lognet_conv_layer.1} parent=31 // pred_check
          %p233 = pneg %p58
        $region34: #{lognet_conv_layer.1} parent=31 // pred_check_branch
          %235 = sbr.rel (%p233) target = $region36
        $region35: #{lognet_conv_layer.1} parent=31 // pred_region
          %s236 = smul.u32 2, %s23
          %p237 = scmp.lt.s32.totalorder %s22, 1
          %s238 = scalar_select %p237, %s22, 1
          %p239 = scmp.lt.s32.totalorder %s236, 1
          %s240 = scalar_select %p239, %s236, 1
          %p241 = scmp.lt.s32.totalorder %s24, 0
          %s242 = scalar_select %p241, %s24, 0
          %s243 = sadd.s32 %s242, %s240
          %s244 = smul.addr %s238, 16
          %s245 = sadd.s32 %s243, %s244
          %s246 = smul.addr %s245, 8
          %s247 = scalar_lea.vmem %s0, %s246
          %s248 = smul.u32 2, %s23
        $region36: #{lognet_conv_layer.1} parent=31 // pred_fallthru
          _
        // Predicated region
        $region37: #{lognet_conv_layer.1} parent=31 // pred_check
          %p249 = pneg %p84
        $region38: #{lognet_conv_layer.1} parent=31 // pred_check_branch
          %251 = sbr.rel (%p249) target = $region40
        $region39: #{lognet_conv_layer.1} parent=31 // pred_region
          %p252 = scmp.lt.s32.totalorder %s22, 1
          %s253 = scalar_select %p252, %s22, 1
          %s254 = smul.addr %s253, 2
          %s255 = smul.addr %s254, 4
          %s256 = scalar_lea.vmem %s1, %s255
        $region40: #{lognet_conv_layer.1} parent=31 // pred_fallthru
          _
      $region32: #{lognet_conv_layer.1} parent=5 // pred_fallthru
        _
      %p257 = scmp.le.s32.totalorder 1, %s15
      %p258 = scmp.lt.s32.totalorder %s15, 3
      %p259 = pnand %p257, %p258
      %p260 = pneg %p259
      // Predicated region
      $region41: #{lognet_conv_layer.1} parent=5 // pred_check
        _
      $region42: #{lognet_conv_layer.1} parent=5 // pred_check_branch
        %262 = sbr.rel (%p259) target = $region44
      $region43: #{lognet_conv_layer.1} parent=5 // pred_region
        %s263 = ssub.s32 %s15, 1
        %s264 = smul.u32 2, %s26
        %p265 = scmp.lt.s32.totalorder %s25, 1
        %s266 = scalar_select %p265, %s25, 1
        %p267 = scmp.lt.s32.totalorder %s264, 1
        %s268 = scalar_select %p267, %s264, 1
        %p269 = scmp.lt.s32.totalorder %s27, 0
        %s270 = scalar_select %p269, %s27, 0
        %s271 = sadd.s32 %s270, %s268
        %s272 = smul.addr %s266, 16
        %s273 = sadd.s32 %s271, %s272
        %s274 = smul.addr %s273, 8
        %s275 = scalar_lea.vmem %s0, %s274
        %p276 = pneg %p64
        %p277 = pneg %p61
        %p278 = scmp.lt.s32.totalorder %s25, 1
        %s279 = scalar_select %p278, %s25, 1
        %s280 = smul.addr %s279, 2
        %s281 = smul.addr %s280, 4
        %s282 = scalar_lea.vmem %s1, %s281
        %p283 = pneg %p90
        %p284 = pneg %p87
        %p285 = pneg %p111
        %p286 = pneg %p108
        %p287 = pneg %p132
        %p288 = pneg %p129
        %p289 = pneg %p153
        %p290 = pneg %p150
        %p291 = pneg %p174
        %p292 = pneg %p171
        %p293 = pneg %p202
        %p294 = pneg %p199
        %s295 = sand.u32 %s189, 1
        %s296 = scalar_lea.sflag [#allocation5], %s295
        %s297 = sand.u32 %s189, 1
        %s298 = smul.addr %s297, 16
        %s299 = scalar_lea.vmem [#allocation4], %s298
        %s300 = smul.u32 2, %s26
        %p301 = scmp.lt.s32.totalorder %s25, 1
        %s302 = scalar_select %p301, %s25, 1
        %p303 = scmp.lt.s32.totalorder %s300, 1
        %s304 = scalar_select %p303, %s300, 1
        %p305 = scmp.lt.s32.totalorder %s27, 0
        %s306 = scalar_select %p305, %s27, 0
        %s307 = sadd.s32 %s306, %s304
        %s308 = smul.addr %s302, 16
        %s309 = sadd.s32 %s307, %s308
        %s310 = smul.addr %s309, 8
        %s311 = scalar_lea.vmem %s0, %s310
        %s312 = smul.u32 2, %s26
        %p313 = scmp.lt.s32.totalorder %s25, 1
        %s314 = scalar_select %p313, %s25, 1
        %s315 = smul.addr %s314, 2
        %s316 = smul.addr %s315, 4
        %s317 = scalar_lea.vmem %s1, %s316
        %s318 = smul.u32 2, %s26
        %p320 = scmp.eq.s32.totalorder %s26, 0
        %p321 = scmp.eq.s32.totalorder %s27, 0
        %p322 = pnand %p320, %p321
        %p323 = pneg %p322
        // Predicated region
        $region45: #{lognet_conv_layer.1} parent=43 // pred_check
          _
        $region46: #{lognet_conv_layer.1} parent=43 // pred_check_branch
          %325 = sbr.rel (%p322) target = $region48
        $region47: #{lognet_conv_layer.1} parent=43 // pred_region
          %v326 = vld [vmem:[%s317] sm:$0xf]
          %v327 = vld [vmem:[%s317 + $0x4] sm:$0xf]
          %v328 = vld [vmem:[%s2] sm:$0xf]
          %v329 = vld [vmem:[%s2 + $0x4] sm:$0xf]
          %v332 = vunpack.c.l.b16 %v326
          %v333 = vunpack.c.l.b16 %v327
          %v334 = vpack.c.b16 %v333, %v332
          %v337 = vunpack.c.l.b16 %v328
          %v338 = vunpack.c.l.b16 %v329
          %v339 = vpack.c.b16 %v338, %v337
          %vm341 = vcmask 130048
          %v343 = vsel %vm341, %v334, 0
          %345 = vmatprep.subr.bf16.mxu0 0
          %346 = vmatpush1.bf16.msra.mxu0 0
          %347 = vmatprep.subr.bf16.mxu0 0
          %348 = vmatpush1.bf16.msra.mxu0 0
          %349 = vmatprep.subr.bf16.mxu0 0
          %350 = vmatpush1.bf16.msra.mxu0 0
          %351 = vmatprep.subr.bf16.mxu0 0
          %352 = vmatpush1.bf16.msra.mxu0 0
          %353 = vmatprep.subr.bf16.mxu0 0
          %354 = vmatpush1.bf16.msra.mxu0 0
          %355 = vmatprep.subr.bf16.mxu0 0
          %356 = vmatpush1.bf16.msra.mxu0 0
          %357 = vmatprep.subr.bf16.mxu0 0
          %358 = vmatpush1.bf16.msra.mxu0 0
          %359 = vmatprep.subr.bf16.mxu0 0
          %360 = vmatpush1.bf16.msra.mxu0 %v339
          %361 = vmatprep.subr.bf16.mxu0 0
          %362 = vmatpush2.bf16.msra.mxu0 0
          %363 = vmatprep.subr.bf16.mxu0 0
          %364 = vmatpush2.bf16.msra.mxu0 0
          %365 = vmatprep.subr.bf16.mxu0 0
          %366 = vmatpush2.bf16.msra.mxu0 0
          %367 = vmatprep.subr.bf16.mxu0 0
          %368 = vmatpush2.bf16.msra.mxu0 0
          %369 = vmatprep.subr.bf16.mxu0 0
          %370 = vmatpush2.bf16.msra.mxu0 0
          %371 = vmatprep.subr.bf16.mxu0 0
          %372 = vmatpush2.bf16.msra.mxu0 0
          %373 = vmatprep.subr.bf16.mxu0 0
          %374 = vmatpush2.bf16.msra.mxu0 0
          %375 = vmatprep.subr.bf16.mxu0 0
          %376 = vmatpush2.bf16.msra.mxu0 0
          %377 = vmatprep.mubr.bf16.mxu0 0
          %378 = vmatmul.mubr.bf16.gmra.mxu0 %v343
          %v379 = vpop.f32.mrf.mxu0
          %v380 = vadd.f32 0.0, %v379
          %v381 = vpop.f32.mrf.mxu0
          %v382 = vpop.f32.mrf.mxu0
          %v383 = vadd.f32 0.0, %v382
          %v384 = vpop.f32.mrf.mxu0
          %385 = vdwg.mxu0
          %v386 = vpack.c.bf16 %v383, %v380
          %v388 = vunpack.c.l.b16 %v386
          %v389 = vunpack.c.h.b16 %v386
          %v390 = vpack.c.b16 %v388, %v388
          %v391 = vpack.c.b16 %v389, %v389
          %vm394 = vcmask 257024
          %395 = vst.msk [vmem:[#allocation2] sm:$0xf] %vm394, %v390
          %396 = vst.msk [vmem:[#allocation2 + $0x4] sm:$0xf] %vm394, %v391
          %s397 = scalar_lea.vmem %s2, 8
          %v398 = vld [vmem:[%s397] sm:$0xf]
          %v399 = vld [vmem:[%s397 + $0x4] sm:$0xf]
          %v402 = vunpack.c.l.b16 %v398
          %v403 = vunpack.c.l.b16 %v399
          %v404 = vpack.c.b16 %v403, %v402
          %406 = vmatprep.subr.bf16.mxu0 0
          %407 = vmatpush1.bf16.msra.mxu0 0
          %408 = vmatprep.subr.bf16.mxu0 0
          %409 = vmatpush1.bf16.msra.mxu0 0
          %410 = vmatprep.subr.bf16.mxu0 0
          %411 = vmatpush1.bf16.msra.mxu0 0
          %412 = vmatprep.subr.bf16.mxu0 0
          %413 = vmatpush1.bf16.msra.mxu0 0
          %414 = vmatprep.subr.bf16.mxu0 0
          %415 = vmatpush1.bf16.msra.mxu0 0
          %416 = vmatprep.subr.bf16.mxu0 0
          %417 = vmatpush1.bf16.msra.mxu0 0
          %418 = vmatprep.subr.bf16.mxu0 0
          %419 = vmatpush1.bf16.msra.mxu0 0
          %420 = vmatprep.subr.bf16.mxu0 0
          %421 = vmatpush1.bf16.msra.mxu0 %v404
          %422 = vmatprep.subr.bf16.mxu0 0
          %423 = vmatpush2.bf16.msra.mxu0 0
          %424 = vmatprep.subr.bf16.mxu0 0
          %425 = vmatpush2.bf16.msra.mxu0 0
          %426 = vmatprep.subr.bf16.mxu0 0
          %427 = vmatpush2.bf16.msra.mxu0 0
          %428 = vmatprep.subr.bf16.mxu0 0
          %429 = vmatpush2.bf16.msra.mxu0 0
          %430 = vmatprep.subr.bf16.mxu0 0
          %431 = vmatpush2.bf16.msra.mxu0 0
          %432 = vmatprep.subr.bf16.mxu0 0
          %433 = vmatpush2.bf16.msra.mxu0 0
          %434 = vmatprep.subr.bf16.mxu0 0
          %435 = vmatpush2.bf16.msra.mxu0 0
          %436 = vmatprep.subr.bf16.mxu0 0
          %437 = vmatpush2.bf16.msra.mxu0 0
          %438 = vmatprep.mubr.bf16.mxu0 0
          %439 = vmatmul.mubr.bf16.gmra.mxu0 %v343
          %v440 = vpop.f32.mrf.mxu0
          %v441 = vadd.f32 0.0, %v440
          %v442 = vpop.f32.mrf.mxu0
          %v443 = vpop.f32.mrf.mxu0
          %v444 = vadd.f32 0.0, %v443
          %v445 = vpop.f32.mrf.mxu0
          %446 = vdwg.mxu0
          %v447 = vpack.c.bf16 %v444, %v441
          %v449 = vunpack.c.l.b16 %v447
          %v450 = vunpack.c.h.b16 %v447
          %v451 = vpack.c.b16 %v449, %v449
          %v452 = vpack.c.b16 %v450, %v450
          %s455 = scalar_lea.vmem [#allocation2], 8
          %456 = vst.msk [vmem:[%s455] sm:$0xf] %vm394, %v451
          %457 = vst.msk [vmem:[%s455 + $0x4] sm:$0xf] %vm394, %v452
          %s458 = scalar_lea.vmem %s2, 16
          %v459 = vld [vmem:[%s458] sm:$0xf]
          %v460 = vld [vmem:[%s458 + $0x4] sm:$0xf]
          %v463 = vunpack.c.l.b16 %v459
          %v464 = vunpack.c.l.b16 %v460
          %v465 = vpack.c.b16 %v464, %v463
          %467 = vmatprep.subr.bf16.mxu0 0
          %468 = vmatpush1.bf16.msra.mxu0 0
          %469 = vmatprep.subr.bf16.mxu0 0
          %470 = vmatpush1.bf16.msra.mxu0 0
          %471 = vmatprep.subr.bf16.mxu0 0
          %472 = vmatpush1.bf16.msra.mxu0 0
          %473 = vmatprep.subr.bf16.mxu0 0
          %474 = vmatpush1.bf16.msra.mxu0 0
          %475 = vmatprep.subr.bf16.mxu0 0
          %476 = vmatpush1.bf16.msra.mxu0 0
          %477 = vmatprep.subr.bf16.mxu0 0
          %478 = vmatpush1.bf16.msra.mxu0 0
          %479 = vmatprep.subr.bf16.mxu0 0
          %480 = vmatpush1.bf16.msra.mxu0 0
          %481 = vmatprep.subr.bf16.mxu0 0
          %482 = vmatpush1.bf16.msra.mxu0 %v465
          %483 = vmatprep.subr.bf16.mxu0 0
          %484 = vmatpush2.bf16.msra.mxu0 0
          %485 = vmatprep.subr.bf16.mxu0 0
          %486 = vmatpush2.bf16.msra.mxu0 0
          %487 = vmatprep.subr.bf16.mxu0 0
          %488 = vmatpush2.bf16.msra.mxu0 0
          %489 = vmatprep.subr.bf16.mxu0 0
          %490 = vmatpush2.bf16.msra.mxu0 0
          %491 = vmatprep.subr.bf16.mxu0 0
          %492 = vmatpush2.bf16.msra.mxu0 0
          %493 = vmatprep.subr.bf16.mxu0 0
          %494 = vmatpush2.bf16.msra.mxu0 0
          %495 = vmatprep.subr.bf16.mxu0 0
          %496 = vmatpush2.bf16.msra.mxu0 0
          %497 = vmatprep.subr.bf16.mxu0 0
          %498 = vmatpush2.bf16.msra.mxu0 0
          %499 = vmatprep.mubr.bf16.mxu0 0
          %500 = vmatmul.mubr.bf16.gmra.mxu0 %v343
          %v501 = vpop.f32.mrf.mxu0
          %v502 = vadd.f32 0.0, %v501
          %v503 = vpop.f32.mrf.mxu0
          %v504 = vpop.f32.mrf.mxu0
          %v505 = vadd.f32 0.0, %v504
          %v506 = vpop.f32.mrf.mxu0
          %507 = vdwg.mxu0
          %v508 = vpack.c.bf16 %v505, %v502
          %v510 = vunpack.c.l.b16 %v508
          %v511 = vunpack.c.h.b16 %v508
          %v512 = vpack.c.b16 %v510, %v510
          %v513 = vpack.c.b16 %v511, %v511
          %s516 = scalar_lea.vmem [#allocation2], 16
          %517 = vst.msk [vmem:[%s516] sm:$0xf] %vm394, %v512
          %518 = vst.msk [vmem:[%s516 + $0x4] sm:$0xf] %vm394, %v513
          %s519 = scalar_lea.vmem %s2, 24
          %v520 = vld [vmem:[%s519] sm:$0xf]
          %v521 = vld [vmem:[%s519 + $0x4] sm:$0xf]
          %v524 = vunpack.c.l.b16 %v520
          %v525 = vunpack.c.l.b16 %v521
          %v526 = vpack.c.b16 %v525, %v524
          %528 = vmatprep.subr.bf16.mxu0 0
          %529 = vmatpush1.bf16.msra.mxu0 0
          %530 = vmatprep.subr.bf16.mxu0 0
          %531 = vmatpush1.bf16.msra.mxu0 0
          %532 = vmatprep.subr.bf16.mxu0 0
          %533 = vmatpush1.bf16.msra.mxu0 0
          %534 = vmatprep.subr.bf16.mxu0 0
          %535 = vmatpush1.bf16.msra.mxu0 0
          %536 = vmatprep.subr.bf16.mxu0 0
          %537 = vmatpush1.bf16.msra.mxu0 0
          %538 = vmatprep.subr.bf16.mxu0 0
          %539 = vmatpush1.bf16.msra.mxu0 0
          %540 = vmatprep.subr.bf16.mxu0 0
          %541 = vmatpush1.bf16.msra.mxu0 0
          %542 = vmatprep.subr.bf16.mxu0 0
          %543 = vmatpush1.bf16.msra.mxu0 %v526
          %544 = vmatprep.subr.bf16.mxu0 0
          %545 = vmatpush2.bf16.msra.mxu0 0
          %546 = vmatprep.subr.bf16.mxu0 0
          %547 = vmatpush2.bf16.msra.mxu0 0
          %548 = vmatprep.subr.bf16.mxu0 0
          %549 = vmatpush2.bf16.msra.mxu0 0
          %550 = vmatprep.subr.bf16.mxu0 0
          %551 = vmatpush2.bf16.msra.mxu0 0
          %552 = vmatprep.subr.bf16.mxu0 0
          %553 = vmatpush2.bf16.msra.mxu0 0
          %554 = vmatprep.subr.bf16.mxu0 0
          %555 = vmatpush2.bf16.msra.mxu0 0
          %556 = vmatprep.subr.bf16.mxu0 0
          %557 = vmatpush2.bf16.msra.mxu0 0
          %558 = vmatprep.subr.bf16.mxu0 0
          %559 = vmatpush2.bf16.msra.mxu0 0
          %560 = vmatprep.mubr.bf16.mxu0 0
          %561 = vmatmul.mubr.bf16.gmra.mxu0 %v343
          %v562 = vpop.f32.mrf.mxu0
          %v563 = vadd.f32 0.0, %v562
          %v564 = vpop.f32.mrf.mxu0
          %v565 = vpop.f32.mrf.mxu0
          %v566 = vadd.f32 0.0, %v565
          %v567 = vpop.f32.mrf.mxu0
          %568 = vdwg.mxu0
          %v569 = vpack.c.bf16 %v566, %v563
          %v571 = vunpack.c.l.b16 %v569
          %v572 = vunpack.c.h.b16 %v569
          %v573 = vpack.c.b16 %v571, %v571
          %v574 = vpack.c.b16 %v572, %v572
          %s577 = scalar_lea.vmem [#allocation2], 24
          %578 = vst.msk [vmem:[%s577] sm:$0xf] %vm394, %v573
          %579 = vst.msk [vmem:[%s577 + $0x4] sm:$0xf] %vm394, %v574
          %s580 = scalar_lea.vmem %s2, 32
          %v581 = vld [vmem:[%s580] sm:$0xf]
          %v582 = vld [vmem:[%s580 + $0x4] sm:$0xf]
          %v585 = vunpack.c.l.b16 %v581
          %v586 = vunpack.c.l.b16 %v582
          %v587 = vpack.c.b16 %v586, %v585
          %589 = vmatprep.subr.bf16.mxu0 0
          %590 = vmatpush1.bf16.msra.mxu0 0
          %591 = vmatprep.subr.bf16.mxu0 0
          %592 = vmatpush1.bf16.msra.mxu0 0
          %593 = vmatprep.subr.bf16.mxu0 0
          %594 = vmatpush1.bf16.msra.mxu0 0
          %595 = vmatprep.subr.bf16.mxu0 0
          %596 = vmatpush1.bf16.msra.mxu0 0
          %597 = vmatprep.subr.bf16.mxu0 0
          %598 = vmatpush1.bf16.msra.mxu0 0
          %599 = vmatprep.subr.bf16.mxu0 0
          %600 = vmatpush1.bf16.msra.mxu0 0
          %601 = vmatprep.subr.bf16.mxu0 0
          %602 = vmatpush1.bf16.msra.mxu0 0
          %603 = vmatprep.subr.bf16.mxu0 0
          %604 = vmatpush1.bf16.msra.mxu0 %v587
          %605 = vmatprep.subr.bf16.mxu0 0
          %606 = vmatpush2.bf16.msra.mxu0 0
          %607 = vmatprep.subr.bf16.mxu0 0
          %608 = vmatpush2.bf16.msra.mxu0 0
          %609 = vmatprep.subr.bf16.mxu0 0
          %610 = vmatpush2.bf16.msra.mxu0 0
          %611 = vmatprep.subr.bf16.mxu0 0
          %612 = vmatpush2.bf16.msra.mxu0 0
          %613 = vmatprep.subr.bf16.mxu0 0
          %614 = vmatpush2.bf16.msra.mxu0 0
          %615 = vmatprep.subr.bf16.mxu0 0
          %616 = vmatpush2.bf16.msra.mxu0 0
          %617 = vmatprep.subr.bf16.mxu0 0
          %618 = vmatpush2.bf16.msra.mxu0 0
          %619 = vmatprep.subr.bf16.mxu0 0
          %620 = vmatpush2.bf16.msra.mxu0 0
          %621 = vmatprep.mubr.bf16.mxu0 0
          %622 = vmatmul.mubr.bf16.gmra.mxu0 %v343
          %v623 = vpop.f32.mrf.mxu0
          %v624 = vadd.f32 0.0, %v623
          %v625 = vpop.f32.mrf.mxu0
          %v626 = vpop.f32.mrf.mxu0
          %v627 = vadd.f32 0.0, %v626
          %v628 = vpop.f32.mrf.mxu0
          %629 = vdwg.mxu0
          %v630 = vpack.c.bf16 %v627, %v624
          %v632 = vunpack.c.l.b16 %v630
          %v633 = vunpack.c.h.b16 %v630
          %v634 = vpack.c.b16 %v632, %v632
          %v635 = vpack.c.b16 %v633, %v633
          %s638 = scalar_lea.vmem [#allocation2], 32
          %639 = vst.msk [vmem:[%s638] sm:$0xf] %vm394, %v634
          %640 = vst.msk [vmem:[%s638 + $0x4] sm:$0xf] %vm394, %v635
          %s641 = scalar_lea.vmem %s2, 40
          %v642 = vld [vmem:[%s641] sm:$0xf]
          %v643 = vld [vmem:[%s641 + $0x4] sm:$0xf]
          %v646 = vunpack.c.l.b16 %v642
          %v647 = vunpack.c.l.b16 %v643
          %v648 = vpack.c.b16 %v647, %v646
          %650 = vmatprep.subr.bf16.mxu0 0
          %651 = vmatpush1.bf16.msra.mxu0 0
          %652 = vmatprep.subr.bf16.mxu0 0
          %653 = vmatpush1.bf16.msra.mxu0 0
          %654 = vmatprep.subr.bf16.mxu0 0
          %655 = vmatpush1.bf16.msra.mxu0 0
          %656 = vmatprep.subr.bf16.mxu0 0
          %657 = vmatpush1.bf16.msra.mxu0 0
          %658 = vmatprep.subr.bf16.mxu0 0
          %659 = vmatpush1.bf16.msra.mxu0 0
          %660 = vmatprep.subr.bf16.mxu0 0
          %661 = vmatpush1.bf16.msra.mxu0 0
          %662 = vmatprep.subr.bf16.mxu0 0
          %663 = vmatpush1.bf16.msra.mxu0 0
          %664 = vmatprep.subr.bf16.mxu0 0
          %665 = vmatpush1.bf16.msra.mxu0 %v648
          %666 = vmatprep.subr.bf16.mxu0 0
          %667 = vmatpush2.bf16.msra.mxu0 0
          %668 = vmatprep.subr.bf16.mxu0 0
          %669 = vmatpush2.bf16.msra.mxu0 0
          %670 = vmatprep.subr.bf16.mxu0 0
          %671 = vmatpush2.bf16.msra.mxu0 0
          %672 = vmatprep.subr.bf16.mxu0 0
          %673 = vmatpush2.bf16.msra.mxu0 0
          %674 = vmatprep.subr.bf16.mxu0 0
          %675 = vmatpush2.bf16.msra.mxu0 0
          %676 = vmatprep.subr.bf16.mxu0 0
          %677 = vmatpush2.bf16.msra.mxu0 0
          %678 = vmatprep.subr.bf16.mxu0 0
          %679 = vmatpush2.bf16.msra.mxu0 0
          %680 = vmatprep.subr.bf16.mxu0 0
          %681 = vmatpush2.bf16.msra.mxu0 0
          %682 = vmatprep.mubr.bf16.mxu0 0
          %683 = vmatmul.mubr.bf16.gmra.mxu0 %v343
          %v684 = vpop.f32.mrf.mxu0
          %v685 = vadd.f32 0.0, %v684
          %v686 = vpop.f32.mrf.mxu0
          %v687 = vpop.f32.mrf.mxu0
          %v688 = vadd.f32 0.0, %v687
          %v689 = vpop.f32.mrf.mxu0
          %690 = vdwg.mxu0
          %v691 = vpack.c.bf16 %v688, %v685
          %v693 = vunpack.c.l.b16 %v691
          %v694 = vunpack.c.h.b16 %v691
          %v695 = vpack.c.b16 %v693, %v693
          %v696 = vpack.c.b16 %v694, %v694
          %s699 = scalar_lea.vmem [#allocation2], 40
          %700 = vst.msk [vmem:[%s699] sm:$0xf] %vm394, %v695
          %701 = vst.msk [vmem:[%s699 + $0x4] sm:$0xf] %vm394, %v696
          %s702 = scalar_lea.vmem %s2, 48
          %v703 = vld [vmem:[%s702] sm:$0xf]
          %v704 = vld [vmem:[%s702 + $0x4] sm:$0xf]
          %v707 = vunpack.c.l.b16 %v703
          %v708 = vunpack.c.l.b16 %v704
          %v709 = vpack.c.b16 %v708, %v707
          %711 = vmatprep.subr.bf16.mxu0 0
          %712 = vmatpush1.bf16.msra.mxu0 0
          %713 = vmatprep.subr.bf16.mxu0 0
          %714 = vmatpush1.bf16.msra.mxu0 0
          %715 = vmatprep.subr.bf16.mxu0 0
          %716 = vmatpush1.bf16.msra.mxu0 0
          %717 = vmatprep.subr.bf16.mxu0 0
          %718 = vmatpush1.bf16.msra.mxu0 0
          %719 = vmatprep.subr.bf16.mxu0 0
          %720 = vmatpush1.bf16.msra.mxu0 0
          %721 = vmatprep.subr.bf16.mxu0 0
          %722 = vmatpush1.bf16.msra.mxu0 0
          %723 = vmatprep.subr.bf16.mxu0 0
          %724 = vmatpush1.bf16.msra.mxu0 0
          %725 = vmatprep.subr.bf16.mxu0 0
          %726 = vmatpush1.bf16.msra.mxu0 %v709
          %727 = vmatprep.subr.bf16.mxu0 0
          %728 = vmatpush2.bf16.msra.mxu0 0
          %729 = vmatprep.subr.bf16.mxu0 0
          %730 = vmatpush2.bf16.msra.mxu0 0
          %731 = vmatprep.subr.bf16.mxu0 0
          %732 = vmatpush2.bf16.msra.mxu0 0
          %733 = vmatprep.subr.bf16.mxu0 0
          %734 = vmatpush2.bf16.msra.mxu0 0
          %735 = vmatprep.subr.bf16.mxu0 0
          %736 = vmatpush2.bf16.msra.mxu0 0
          %737 = vmatprep.subr.bf16.mxu0 0
          %738 = vmatpush2.bf16.msra.mxu0 0
          %739 = vmatprep.subr.bf16.mxu0 0
          %740 = vmatpush2.bf16.msra.mxu0 0
          %741 = vmatprep.subr.bf16.mxu0 0
          %742 = vmatpush2.bf16.msra.mxu0 0
          %743 = vmatprep.mubr.bf16.mxu0 0
          %744 = vmatmul.mubr.bf16.gmra.mxu0 %v343
          %v745 = vpop.f32.mrf.mxu0
          %v746 = vadd.f32 0.0, %v745
          %v747 = vpop.f32.mrf.mxu0
          %v748 = vpop.f32.mrf.mxu0
          %v749 = vadd.f32 0.0, %v748
          %v750 = vpop.f32.mrf.mxu0
          %751 = vdwg.mxu0
          %v752 = vpack.c.bf16 %v749, %v746
          %v754 = vunpack.c.l.b16 %v752
          %v755 = vunpack.c.h.b16 %v752
          %v756 = vpack.c.b16 %v754, %v754
          %v757 = vpack.c.b16 %v755, %v755
          %s760 = scalar_lea.vmem [#allocation2], 48
          %761 = vst.msk [vmem:[%s760] sm:$0xf] %vm394, %v756
          %762 = vst.msk [vmem:[%s760 + $0x4] sm:$0xf] %vm394, %v757
          %s763 = scalar_lea.vmem %s2, 56
          %v764 = vld [vmem:[%s763] sm:$0xf]
          %v765 = vld [vmem:[%s763 + $0x4] sm:$0xf]
          %v768 = vunpack.c.l.b16 %v764
          %v769 = vunpack.c.l.b16 %v765
          %v770 = vpack.c.b16 %v769, %v768
          %772 = vmatprep.subr.bf16.mxu0 0
          %773 = vmatpush1.bf16.msra.mxu0 0
          %774 = vmatprep.subr.bf16.mxu0 0
          %775 = vmatpush1.bf16.msra.mxu0 0
          %776 = vmatprep.subr.bf16.mxu0 0
          %777 = vmatpush1.bf16.msra.mxu0 0
          %778 = vmatprep.subr.bf16.mxu0 0
          %779 = vmatpush1.bf16.msra.mxu0 0
          %780 = vmatprep.subr.bf16.mxu0 0
          %781 = vmatpush1.bf16.msra.mxu0 0
          %782 = vmatprep.subr.bf16.mxu0 0
          %783 = vmatpush1.bf16.msra.mxu0 0
          %784 = vmatprep.subr.bf16.mxu0 0
          %785 = vmatpush1.bf16.msra.mxu0 0
          %786 = vmatprep.subr.bf16.mxu0 0
          %787 = vmatpush1.bf16.msra.mxu0 %v770
          %788 = vmatprep.subr.bf16.mxu0 0
          %789 = vmatpush2.bf16.msra.mxu0 0
          %790 = vmatprep.subr.bf16.mxu0 0
          %791 = vmatpush2.bf16.msra.mxu0 0
          %792 = vmatprep.subr.bf16.mxu0 0
          %793 = vmatpush2.bf16.msra.mxu0 0
          %794 = vmatprep.subr.bf16.mxu0 0
          %795 = vmatpush2.bf16.msra.mxu0 0
          %796 = vmatprep.subr.bf16.mxu0 0
          %797 = vmatpush2.bf16.msra.mxu0 0
          %798 = vmatprep.subr.bf16.mxu0 0
          %799 = vmatpush2.bf16.msra.mxu0 0
          %800 = vmatprep.subr.bf16.mxu0 0
          %801 = vmatpush2.bf16.msra.mxu0 0
          %802 = vmatprep.subr.bf16.mxu0 0
          %803 = vmatpush2.bf16.msra.mxu0 0
          %804 = vmatprep.mubr.bf16.mxu0 0
          %805 = vmatmul.mubr.bf16.gmra.mxu0 %v343
          %v806 = vpop.f32.mrf.mxu0
          %v807 = vadd.f32 0.0, %v806
          %v808 = vpop.f32.mrf.mxu0
          %v809 = vpop.f32.mrf.mxu0
          %v810 = vadd.f32 0.0, %v809
          %v811 = vpop.f32.mrf.mxu0
          %812 = vdwg.mxu0
          %v813 = vpack.c.bf16 %v810, %v807
          %v815 = vunpack.c.l.b16 %v813
          %v816 = vunpack.c.h.b16 %v813
          %v817 = vpack.c.b16 %v815, %v815
          %v818 = vpack.c.b16 %v816, %v816
          %s821 = scalar_lea.vmem [#allocation2], 56
          %822 = vst.msk [vmem:[%s821] sm:$0xf] %vm394, %v817
          %823 = vst.msk [vmem:[%s821 + $0x4] sm:$0xf] %vm394, %v818
        $region48: #{lognet_conv_layer.1} parent=43 // pred_fallthru
          _
        // Predicated region
        $region49: #{lognet_conv_layer.1} parent=43 // pred_check
          %p824 = pneg %p321
        $region50: #{lognet_conv_layer.1} parent=43 // pred_check_branch
          %826 = sbr.rel (%p824) target = $region52
        $region51: #{lognet_conv_layer.1} parent=43 // pred_region
          %vm827 = vcmask 261120
          %828 = vst.msk [vmem:[#allocation3] sm:$0xff] %vm827, 0.0
          %829 = vst.msk [vmem:[#allocation3 + $0x8] sm:$0xff] %vm827, 0.0
          %830 = vst.msk [vmem:[#allocation3 + $0x10] sm:$0xff] %vm827, 0.0
          %831 = vst.msk [vmem:[#allocation3 + $0x18] sm:$0xff] %vm827, 0.0
          %832 = vst.msk [vmem:[#allocation3 + $0x20] sm:$0xff] %vm827, 0.0
          %833 = vst.msk [vmem:[#allocation3 + $0x28] sm:$0xff] %vm827, 0.0
          %834 = vst.msk [vmem:[#allocation3 + $0x30] sm:$0xff] %vm827, 0.0
          %835 = vst.msk [vmem:[#allocation3 + $0x38] sm:$0xff] %vm827, 0.0
          %836 = vst.msk [vmem:[#allocation3 + $0x40] sm:$0xff] %vm827, 0.0
          %837 = vst.msk [vmem:[#allocation3 + $0x48] sm:$0xff] %vm827, 0.0
          %838 = vst.msk [vmem:[#allocation3 + $0x50] sm:$0xff] %vm827, 0.0
          %839 = vst.msk [vmem:[#allocation3 + $0x58] sm:$0xff] %vm827, 0.0
          %840 = vst.msk [vmem:[#allocation3 + $0x60] sm:$0xff] %vm827, 0.0
          %841 = vst.msk [vmem:[#allocation3 + $0x68] sm:$0xff] %vm827, 0.0
          %842 = vst.msk [vmem:[#allocation3 + $0x70] sm:$0xff] %vm827, 0.0
          %843 = vst.msk [vmem:[#allocation3 + $0x78] sm:$0xff] %vm827, 0.0
        $region52: #{lognet_conv_layer.1} parent=43 // pred_fallthru
          _
        %s844 = smul.u32 %s27, 16
        %v845 = vld [vmem:[%s311] sm:$0xff]
        %v846 = vld [vmem:[%s311 + $0x8] sm:$0xff]
        %v847 = vpack.c.bf16 %v846, %v845
        %v848 = vld [vmem:[#allocation3] sm:$0xff]
        %v849 = vld [vmem:[#allocation3 + $0x8] sm:$0xff]
        %s850 = sshra.s32 %s844, 3
        %s851 = sand.u32 %s844, 7
        %s852 = smul.addr %s850, 4
        %s853 = scalar_lea.vmem [#allocation2], %s852
        %v854 = vld [vmem:[%s853] sm:$0xf]
        %v855 = vld [vmem:[%s853 + $0x4] sm:$0xf]
        %v858 = vunpack.c.l.b16 %v854
        %v859 = vunpack.c.l.b16 %v855
        %v860 = vpack.c.b16 %v859, %v858
        %vm862 = vcmask 130048
        %v864 = vsel %vm862, %v847, 0
        %866 = vmatprep.subr.bf16.mxu0 0
        %867 = vmatpush1.bf16.msra.mxu0 0
        %868 = vmatprep.subr.bf16.mxu0 0
        %869 = vmatpush1.bf16.msra.mxu0 0
        %870 = vmatprep.subr.bf16.mxu0 0
        %871 = vmatpush1.bf16.msra.mxu0 0
        %872 = vmatprep.subr.bf16.mxu0 0
        %873 = vmatpush1.bf16.msra.mxu0 0
        %874 = vmatprep.subr.bf16.mxu0 0
        %875 = vmatpush1.bf16.msra.mxu0 0
        %876 = vmatprep.subr.bf16.mxu0 0
        %877 = vmatpush1.bf16.msra.mxu0 0
        %878 = vmatprep.subr.bf16.mxu0 0
        %879 = vmatpush1.bf16.msra.mxu0 0
        %880 = vmatprep.subr.bf16.mxu0 0
        %881 = vmatpush1.bf16.msra.mxu0 %v860
        %882 = vmatprep.subr.bf16.mxu0 0
        %883 = vmatpush2.bf16.msra.mxu0 0
        %884 = vmatprep.subr.bf16.mxu0 0
        %885 = vmatpush2.bf16.msra.mxu0 0
        %886 = vmatprep.subr.bf16.mxu0 0
        %887 = vmatpush2.bf16.msra.mxu0 0
        %888 = vmatprep.subr.bf16.mxu0 0
        %889 = vmatpush2.bf16.msra.mxu0 0
        %890 = vmatprep.subr.bf16.mxu0 0
        %891 = vmatpush2.bf16.msra.mxu0 0
        %892 = vmatprep.subr.bf16.mxu0 0
        %893 = vmatpush2.bf16.msra.mxu0 0
        %894 = vmatprep.subr.bf16.mxu0 0
        %895 = vmatpush2.bf16.msra.mxu0 0
        %896 = vmatprep.subr.bf16.mxu0 0
        %897 = vmatpush2.bf16.msra.mxu0 0
        %898 = vmatprep.mubr.bf16.mxu0 0
        %899 = vmatmul.mubr.bf16.gmra.mxu0 %v864
        %v900 = vpop.f32.mrf.mxu0
        %v901 = vadd.f32 0.0, %v900
        %v902 = vpop.f32.mrf.mxu0
        %v903 = vpop.f32.mrf.mxu0
        %v904 = vadd.f32 0.0, %v903
        %v905 = vpop.f32.mrf.mxu0
        %906 = vdwg.mxu0
        %v907 = vadd.f32 %v848, %v901
        %v908 = vadd.f32 %v849, %v904
        %vm909 = vcmask 261120
        %910 = vst.msk [vmem:[#allocation3] sm:$0xff] %vm909, %v907
        %911 = vst.msk [vmem:[#allocation3 + $0x8] sm:$0xff] %vm909, %v908
        %s912 = scalar_lea.vmem %s311, 16
        %v913 = vld [vmem:[%s912] sm:$0xff]
        %v914 = vld [vmem:[%s912 + $0x8] sm:$0xff]
        %v915 = vpack.c.bf16 %v914, %v913
        %s916 = scalar_lea.vmem [#allocation3], 16
        %v917 = vld [vmem:[%s916] sm:$0xff]
        %v918 = vld [vmem:[%s916 + $0x8] sm:$0xff]
        %s919 = sadd.s32 %s850, 2
        %s920 = smul.addr %s919, 4
        %s921 = scalar_lea.vmem [#allocation2], %s920
        %v922 = vld [vmem:[%s921] sm:$0xf]
        %v923 = vld [vmem:[%s921 + $0x4] sm:$0xf]
        %v926 = vunpack.c.l.b16 %v922
        %v927 = vunpack.c.l.b16 %v923
        %v928 = vpack.c.b16 %v927, %v926
        %v931 = vsel %vm862, %v915, 0
        %933 = vmatprep.subr.bf16.mxu0 0
        %934 = vmatpush1.bf16.msra.mxu0 0
        %935 = vmatprep.subr.bf16.mxu0 0
        %936 = vmatpush1.bf16.msra.mxu0 0
        %937 = vmatprep.subr.bf16.mxu0 0
        %938 = vmatpush1.bf16.msra.mxu0 0
        %939 = vmatprep.subr.bf16.mxu0 0
        %940 = vmatpush1.bf16.msra.mxu0 0
        %941 = vmatprep.subr.bf16.mxu0 0
        %942 = vmatpush1.bf16.msra.mxu0 0
        %943 = vmatprep.subr.bf16.mxu0 0
        %944 = vmatpush1.bf16.msra.mxu0 0
        %945 = vmatprep.subr.bf16.mxu0 0
        %946 = vmatpush1.bf16.msra.mxu0 0
        %947 = vmatprep.subr.bf16.mxu0 0
        %948 = vmatpush1.bf16.msra.mxu0 %v928
        %949 = vmatprep.subr.bf16.mxu0 0
        %950 = vmatpush2.bf16.msra.mxu0 0
        %951 = vmatprep.subr.bf16.mxu0 0
        %952 = vmatpush2.bf16.msra.mxu0 0
        %953 = vmatprep.subr.bf16.mxu0 0
        %954 = vmatpush2.bf16.msra.mxu0 0
        %955 = vmatprep.subr.bf16.mxu0 0
        %956 = vmatpush2.bf16.msra.mxu0 0
        %957 = vmatprep.subr.bf16.mxu0 0
        %958 = vmatpush2.bf16.msra.mxu0 0
        %959 = vmatprep.subr.bf16.mxu0 0
        %960 = vmatpush2.bf16.msra.mxu0 0
        %961 = vmatprep.subr.bf16.mxu0 0
        %962 = vmatpush2.bf16.msra.mxu0 0
        %963 = vmatprep.subr.bf16.mxu0 0
        %964 = vmatpush2.bf16.msra.mxu0 0
        %965 = vmatprep.mubr.bf16.mxu0 0
        %966 = vmatmul.mubr.bf16.gmra.mxu0 %v931
        %v967 = vpop.f32.mrf.mxu0
        %v968 = vadd.f32 0.0, %v967
        %v969 = vpop.f32.mrf.mxu0
        %v970 = vpop.f32.mrf.mxu0
        %v971 = vadd.f32 0.0, %v970
        %v972 = vpop.f32.mrf.mxu0
        %973 = vdwg.mxu0
        %v974 = vadd.f32 %v917, %v968
        %v975 = vadd.f32 %v918, %v971
        %976 = vst.msk [vmem:[%s916] sm:$0xff] %vm909, %v974
        %977 = vst.msk [vmem:[%s916 + $0x8] sm:$0xff] %vm909, %v975
        %s978 = scalar_lea.vmem %s311, 32
        %v979 = vld [vmem:[%s978] sm:$0xff]
        %v980 = vld [vmem:[%s978 + $0x8] sm:$0xff]
        %v981 = vpack.c.bf16 %v980, %v979
        %s982 = scalar_lea.vmem [#allocation3], 32
        %v983 = vld [vmem:[%s982] sm:$0xff]
        %v984 = vld [vmem:[%s982 + $0x8] sm:$0xff]
        %s985 = sadd.s32 %s850, 4
        %s986 = smul.addr %s985, 4
        %s987 = scalar_lea.vmem [#allocation2], %s986
        %v988 = vld [vmem:[%s987] sm:$0xf]
        %v989 = vld [vmem:[%s987 + $0x4] sm:$0xf]
        %v992 = vunpack.c.l.b16 %v988
        %v993 = vunpack.c.l.b16 %v989
        %v994 = vpack.c.b16 %v993, %v992
        %v997 = vsel %vm862, %v981, 0
        %999 = vmatprep.subr.bf16.mxu0 0
        %1000 = vmatpush1.bf16.msra.mxu0 0
        %1001 = vmatprep.subr.bf16.mxu0 0
        %1002 = vmatpush1.bf16.msra.mxu0 0
        %1003 = vmatprep.subr.bf16.mxu0 0
        %1004 = vmatpush1.bf16.msra.mxu0 0
        %1005 = vmatprep.subr.bf16.mxu0 0
        %1006 = vmatpush1.bf16.msra.mxu0 0
        %1007 = vmatprep.subr.bf16.mxu0 0
        %1008 = vmatpush1.bf16.msra.mxu0 0
        %1009 = vmatprep.subr.bf16.mxu0 0
        %1010 = vmatpush1.bf16.msra.mxu0 0
        %1011 = vmatprep.subr.bf16.mxu0 0
        %1012 = vmatpush1.bf16.msra.mxu0 0
        %1013 = vmatprep.subr.bf16.mxu0 0
        %1014 = vmatpush1.bf16.msra.mxu0 %v994
        %1015 = vmatprep.subr.bf16.mxu0 0
        %1016 = vmatpush2.bf16.msra.mxu0 0
        %1017 = vmatprep.subr.bf16.mxu0 0
        %1018 = vmatpush2.bf16.msra.mxu0 0
        %1019 = vmatprep.subr.bf16.mxu0 0
        %1020 = vmatpush2.bf16.msra.mxu0 0
        %1021 = vmatprep.subr.bf16.mxu0 0
        %1022 = vmatpush2.bf16.msra.mxu0 0
        %1023 = vmatprep.subr.bf16.mxu0 0
        %1024 = vmatpush2.bf16.msra.mxu0 0
        %1025 = vmatprep.subr.bf16.mxu0 0
        %1026 = vmatpush2.bf16.msra.mxu0 0
        %1027 = vmatprep.subr.bf16.mxu0 0
        %1028 = vmatpush2.bf16.msra.mxu0 0
        %1029 = vmatprep.subr.bf16.mxu0 0
        %1030 = vmatpush2.bf16.msra.mxu0 0
        %1031 = vmatprep.mubr.bf16.mxu0 0
        %1032 = vmatmul.mubr.bf16.gmra.mxu0 %v997
        %v1033 = vpop.f32.mrf.mxu0
        %v1034 = vadd.f32 0.0, %v1033
        %v1035 = vpop.f32.mrf.mxu0
        %v1036 = vpop.f32.mrf.mxu0
        %v1037 = vadd.f32 0.0, %v1036
        %v1038 = vpop.f32.mrf.mxu0
        %1039 = vdwg.mxu0
        %v1040 = vadd.f32 %v983, %v1034
        %v1041 = vadd.f32 %v984, %v1037
        %1042 = vst.msk [vmem:[%s982] sm:$0xff] %vm909, %v1040
        %1043 = vst.msk [vmem:[%s982 + $0x8] sm:$0xff] %vm909, %v1041
        %s1044 = scalar_lea.vmem %s311, 48
        %v1045 = vld [vmem:[%s1044] sm:$0xff]
        %v1046 = vld [vmem:[%s1044 + $0x8] sm:$0xff]
        %v1047 = vpack.c.bf16 %v1046, %v1045
        %s1048 = scalar_lea.vmem [#allocation3], 48
        %v1049 = vld [vmem:[%s1048] sm:$0xff]
        %v1050 = vld [vmem:[%s1048 + $0x8] sm:$0xff]
        %s1051 = sadd.s32 %s850, 6
        %s1052 = smul.addr %s1051, 4
        %s1053 = scalar_lea.vmem [#allocation2], %s1052
        %v1054 = vld [vmem:[%s1053] sm:$0xf]
        %v1055 = vld [vmem:[%s1053 + $0x4] sm:$0xf]
        %v1058 = vunpack.c.l.b16 %v1054
        %v1059 = vunpack.c.l.b16 %v1055
        %v1060 = vpack.c.b16 %v1059, %v1058
        %v1063 = vsel %vm862, %v1047, 0
        %1065 = vmatprep.subr.bf16.mxu0 0
        %1066 = vmatpush1.bf16.msra.mxu0 0
        %1067 = vmatprep.subr.bf16.mxu0 0
        %1068 = vmatpush1.bf16.msra.mxu0 0
        %1069 = vmatprep.subr.bf16.mxu0 0
        %1070 = vmatpush1.bf16.msra.mxu0 0
        %1071 = vmatprep.subr.bf16.mxu0 0
        %1072 = vmatpush1.bf16.msra.mxu0 0
        %1073 = vmatprep.subr.bf16.mxu0 0
        %1074 = vmatpush1.bf16.msra.mxu0 0
        %1075 = vmatprep.subr.bf16.mxu0 0
        %1076 = vmatpush1.bf16.msra.mxu0 0
        %1077 = vmatprep.subr.bf16.mxu0 0
        %1078 = vmatpush1.bf16.msra.mxu0 0
        %1079 = vmatprep.subr.bf16.mxu0 0
        %1080 = vmatpush1.bf16.msra.mxu0 %v1060
        %1081 = vmatprep.subr.bf16.mxu0 0
        %1082 = vmatpush2.bf16.msra.mxu0 0
        %1083 = vmatprep.subr.bf16.mxu0 0
        %1084 = vmatpush2.bf16.msra.mxu0 0
        %1085 = vmatprep.subr.bf16.mxu0 0
        %1086 = vmatpush2.bf16.msra.mxu0 0
        %1087 = vmatprep.subr.bf16.mxu0 0
        %1088 = vmatpush2.bf16.msra.mxu0 0
        %1089 = vmatprep.subr.bf16.mxu0 0
        %1090 = vmatpush2.bf16.msra.mxu0 0
        %1091 = vmatprep.subr.bf16.mxu0 0
        %1092 = vmatpush2.bf16.msra.mxu0 0
        %1093 = vmatprep.subr.bf16.mxu0 0
        %1094 = vmatpush2.bf16.msra.mxu0 0
        %1095 = vmatprep.subr.bf16.mxu0 0
        %1096 = vmatpush2.bf16.msra.mxu0 0
        %1097 = vmatprep.mubr.bf16.mxu0 0
        %1098 = vmatmul.mubr.bf16.gmra.mxu0 %v1063
        %v1099 = vpop.f32.mrf.mxu0
        %v1100 = vadd.f32 0.0, %v1099
        %v1101 = vpop.f32.mrf.mxu0
        %v1102 = vpop.f32.mrf.mxu0
        %v1103 = vadd.f32 0.0, %v1102
        %v1104 = vpop.f32.mrf.mxu0
        %1105 = vdwg.mxu0
        %v1106 = vadd.f32 %v1049, %v1100
        %v1107 = vadd.f32 %v1050, %v1103
        %1108 = vst.msk [vmem:[%s1048] sm:$0xff] %vm909, %v1106
        %1109 = vst.msk [vmem:[%s1048 + $0x8] sm:$0xff] %vm909, %v1107
        %s1110 = scalar_lea.vmem %s311, 64
        %v1111 = vld [vmem:[%s1110] sm:$0xff]
        %v1112 = vld [vmem:[%s1110 + $0x8] sm:$0xff]
        %v1113 = vpack.c.bf16 %v1112, %v1111
        %s1114 = scalar_lea.vmem [#allocation3], 64
        %v1115 = vld [vmem:[%s1114] sm:$0xff]
        %v1116 = vld [vmem:[%s1114 + $0x8] sm:$0xff]
        %s1117 = sadd.s32 %s850, 8
        %s1118 = smul.addr %s1117, 4
        %s1119 = scalar_lea.vmem [#allocation2], %s1118
        %v1120 = vld [vmem:[%s1119] sm:$0xf]
        %v1121 = vld [vmem:[%s1119 + $0x4] sm:$0xf]
        %v1124 = vunpack.c.l.b16 %v1120
        %v1125 = vunpack.c.l.b16 %v1121
        %v1126 = vpack.c.b16 %v1125, %v1124
        %v1129 = vsel %vm862, %v1113, 0
        %1131 = vmatprep.subr.bf16.mxu0 0
        %1132 = vmatpush1.bf16.msra.mxu0 0
        %1133 = vmatprep.subr.bf16.mxu0 0
        %1134 = vmatpush1.bf16.msra.mxu0 0
        %1135 = vmatprep.subr.bf16.mxu0 0
        %1136 = vmatpush1.bf16.msra.mxu0 0
        %1137 = vmatprep.subr.bf16.mxu0 0
        %1138 = vmatpush1.bf16.msra.mxu0 0
        %1139 = vmatprep.subr.bf16.mxu0 0
        %1140 = vmatpush1.bf16.msra.mxu0 0
        %1141 = vmatprep.subr.bf16.mxu0 0
        %1142 = vmatpush1.bf16.msra.mxu0 0
        %1143 = vmatprep.subr.bf16.mxu0 0
        %1144 = vmatpush1.bf16.msra.mxu0 0
        %1145 = vmatprep.subr.bf16.mxu0 0
        %1146 = vmatpush1.bf16.msra.mxu0 %v1126
        %1147 = vmatprep.subr.bf16.mxu0 0
        %1148 = vmatpush2.bf16.msra.mxu0 0
        %1149 = vmatprep.subr.bf16.mxu0 0
        %1150 = vmatpush2.bf16.msra.mxu0 0
        %1151 = vmatprep.subr.bf16.mxu0 0
        %1152 = vmatpush2.bf16.msra.mxu0 0
        %1153 = vmatprep.subr.bf16.mxu0 0
        %1154 = vmatpush2.bf16.msra.mxu0 0
        %1155 = vmatprep.subr.bf16.mxu0 0
        %1156 = vmatpush2.bf16.msra.mxu0 0
        %1157 = vmatprep.subr.bf16.mxu0 0
        %1158 = vmatpush2.bf16.msra.mxu0 0
        %1159 = vmatprep.subr.bf16.mxu0 0
        %1160 = vmatpush2.bf16.msra.mxu0 0
        %1161 = vmatprep.subr.bf16.mxu0 0
        %1162 = vmatpush2.bf16.msra.mxu0 0
        %1163 = vmatprep.mubr.bf16.mxu0 0
        %1164 = vmatmul.mubr.bf16.gmra.mxu0 %v1129
        %v1165 = vpop.f32.mrf.mxu0
        %v1166 = vadd.f32 0.0, %v1165
        %v1167 = vpop.f32.mrf.mxu0
        %v1168 = vpop.f32.mrf.mxu0
        %v1169 = vadd.f32 0.0, %v1168
        %v1170 = vpop.f32.mrf.mxu0
        %1171 = vdwg.mxu0
        %v1172 = vadd.f32 %v1115, %v1166
        %v1173 = vadd.f32 %v1116, %v1169
        %1174 = vst.msk [vmem:[%s1114] sm:$0xff] %vm909, %v1172
        %1175 = vst.msk [vmem:[%s1114 + $0x8] sm:$0xff] %vm909, %v1173
        %s1176 = scalar_lea.vmem %s311, 80
        %v1177 = vld [vmem:[%s1176] sm:$0xff]
        %v1178 = vld [vmem:[%s1176 + $0x8] sm:$0xff]
        %v1179 = vpack.c.bf16 %v1178, %v1177
        %s1180 = scalar_lea.vmem [#allocation3], 80
        %v1181 = vld [vmem:[%s1180] sm:$0xff]
        %v1182 = vld [vmem:[%s1180 + $0x8] sm:$0xff]
        %s1183 = sadd.s32 %s850, 10
        %s1184 = smul.addr %s1183, 4
        %s1185 = scalar_lea.vmem [#allocation2], %s1184
        %v1186 = vld [vmem:[%s1185] sm:$0xf]
        %v1187 = vld [vmem:[%s1185 + $0x4] sm:$0xf]
        %v1190 = vunpack.c.l.b16 %v1186
        %v1191 = vunpack.c.l.b16 %v1187
        %v1192 = vpack.c.b16 %v1191, %v1190
        %v1195 = vsel %vm862, %v1179, 0
        %1197 = vmatprep.subr.bf16.mxu0 0
        %1198 = vmatpush1.bf16.msra.mxu0 0
        %1199 = vmatprep.subr.bf16.mxu0 0
        %1200 = vmatpush1.bf16.msra.mxu0 0
        %1201 = vmatprep.subr.bf16.mxu0 0
        %1202 = vmatpush1.bf16.msra.mxu0 0
        %1203 = vmatprep.subr.bf16.mxu0 0
        %1204 = vmatpush1.bf16.msra.mxu0 0
        %1205 = vmatprep.subr.bf16.mxu0 0
        %1206 = vmatpush1.bf16.msra.mxu0 0
        %1207 = vmatprep.subr.bf16.mxu0 0
        %1208 = vmatpush1.bf16.msra.mxu0 0
        %1209 = vmatprep.subr.bf16.mxu0 0
        %1210 = vmatpush1.bf16.msra.mxu0 0
        %1211 = vmatprep.subr.bf16.mxu0 0
        %1212 = vmatpush1.bf16.msra.mxu0 %v1192
        %1213 = vmatprep.subr.bf16.mxu0 0
        %1214 = vmatpush2.bf16.msra.mxu0 0
        %1215 = vmatprep.subr.bf16.mxu0 0
        %1216 = vmatpush2.bf16.msra.mxu0 0
        %1217 = vmatprep.subr.bf16.mxu0 0
        %1218 = vmatpush2.bf16.msra.mxu0 0
        %1219 = vmatprep.subr.bf16.mxu0 0
        %1220 = vmatpush2.bf16.msra.mxu0 0
        %1221 = vmatprep.subr.bf16.mxu0 0
        %1222 = vmatpush2.bf16.msra.mxu0 0
        %1223 = vmatprep.subr.bf16.mxu0 0
        %1224 = vmatpush2.bf16.msra.mxu0 0
        %1225 = vmatprep.subr.bf16.mxu0 0
        %1226 = vmatpush2.bf16.msra.mxu0 0
        %1227 = vmatprep.subr.bf16.mxu0 0
        %1228 = vmatpush2.bf16.msra.mxu0 0
        %1229 = vmatprep.mubr.bf16.mxu0 0
        %1230 = vmatmul.mubr.bf16.gmra.mxu0 %v1195
        %v1231 = vpop.f32.mrf.mxu0
        %v1232 = vadd.f32 0.0, %v1231
        %v1233 = vpop.f32.mrf.mxu0
        %v1234 = vpop.f32.mrf.mxu0
        %v1235 = vadd.f32 0.0, %v1234
        %v1236 = vpop.f32.mrf.mxu0
        %1237 = vdwg.mxu0
        %v1238 = vadd.f32 %v1181, %v1232
        %v1239 = vadd.f32 %v1182, %v1235
        %1240 = vst.msk [vmem:[%s1180] sm:$0xff] %vm909, %v1238
        %1241 = vst.msk [vmem:[%s1180 + $0x8] sm:$0xff] %vm909, %v1239
        %s1242 = scalar_lea.vmem %s311, 96
        %v1243 = vld [vmem:[%s1242] sm:$0xff]
        %v1244 = vld [vmem:[%s1242 + $0x8] sm:$0xff]
        %v1245 = vpack.c.bf16 %v1244, %v1243
        %s1246 = scalar_lea.vmem [#allocation3], 96
        %v1247 = vld [vmem:[%s1246] sm:$0xff]
        %v1248 = vld [vmem:[%s1246 + $0x8] sm:$0xff]
        %s1249 = sadd.s32 %s850, 12
        %s1250 = smul.addr %s1249, 4
        %s1251 = scalar_lea.vmem [#allocation2], %s1250
        %v1252 = vld [vmem:[%s1251] sm:$0xf]
        %v1253 = vld [vmem:[%s1251 + $0x4] sm:$0xf]
        %v1256 = vunpack.c.l.b16 %v1252
        %v1257 = vunpack.c.l.b16 %v1253
        %v1258 = vpack.c.b16 %v1257, %v1256
        %v1261 = vsel %vm862, %v1245, 0
        %1263 = vmatprep.subr.bf16.mxu0 0
        %1264 = vmatpush1.bf16.msra.mxu0 0
        %1265 = vmatprep.subr.bf16.mxu0 0
        %1266 = vmatpush1.bf16.msra.mxu0 0
        %1267 = vmatprep.subr.bf16.mxu0 0
        %1268 = vmatpush1.bf16.msra.mxu0 0
        %1269 = vmatprep.subr.bf16.mxu0 0
        %1270 = vmatpush1.bf16.msra.mxu0 0
        %1271 = vmatprep.subr.bf16.mxu0 0
        %1272 = vmatpush1.bf16.msra.mxu0 0
        %1273 = vmatprep.subr.bf16.mxu0 0
        %1274 = vmatpush1.bf16.msra.mxu0 0
        %1275 = vmatprep.subr.bf16.mxu0 0
        %1276 = vmatpush1.bf16.msra.mxu0 0
        %1277 = vmatprep.subr.bf16.mxu0 0
        %1278 = vmatpush1.bf16.msra.mxu0 %v1258
        %1279 = vmatprep.subr.bf16.mxu0 0
        %1280 = vmatpush2.bf16.msra.mxu0 0
        %1281 = vmatprep.subr.bf16.mxu0 0
        %1282 = vmatpush2.bf16.msra.mxu0 0
        %1283 = vmatprep.subr.bf16.mxu0 0
        %1284 = vmatpush2.bf16.msra.mxu0 0
        %1285 = vmatprep.subr.bf16.mxu0 0
        %1286 = vmatpush2.bf16.msra.mxu0 0
        %1287 = vmatprep.subr.bf16.mxu0 0
        %1288 = vmatpush2.bf16.msra.mxu0 0
        %1289 = vmatprep.subr.bf16.mxu0 0
        %1290 = vmatpush2.bf16.msra.mxu0 0
        %1291 = vmatprep.subr.bf16.mxu0 0
        %1292 = vmatpush2.bf16.msra.mxu0 0
        %1293 = vmatprep.subr.bf16.mxu0 0
        %1294 = vmatpush2.bf16.msra.mxu0 0
        %1295 = vmatprep.mubr.bf16.mxu0 0
        %1296 = vmatmul.mubr.bf16.gmra.mxu0 %v1261
        %v1297 = vpop.f32.mrf.mxu0
        %v1298 = vadd.f32 0.0, %v1297
        %v1299 = vpop.f32.mrf.mxu0
        %v1300 = vpop.f32.mrf.mxu0
        %v1301 = vadd.f32 0.0, %v1300
        %v1302 = vpop.f32.mrf.mxu0
        %1303 = vdwg.mxu0
        %v1304 = vadd.f32 %v1247, %v1298
        %v1305 = vadd.f32 %v1248, %v1301
        %1306 = vst.msk [vmem:[%s1246] sm:$0xff] %vm909, %v1304
        %1307 = vst.msk [vmem:[%s1246 + $0x8] sm:$0xff] %vm909, %v1305
        %s1308 = scalar_lea.vmem %s311, 112
        %v1309 = vld [vmem:[%s1308] sm:$0xff]
        %v1310 = vld [vmem:[%s1308 + $0x8] sm:$0xff]
        %v1311 = vpack.c.bf16 %v1310, %v1309
        %s1312 = scalar_lea.vmem [#allocation3], 112
        %v1313 = vld [vmem:[%s1312] sm:$0xff]
        %v1314 = vld [vmem:[%s1312 + $0x8] sm:$0xff]
        %s1315 = sadd.s32 %s850, 14
        %s1316 = smul.addr %s1315, 4
        %s1317 = scalar_lea.vmem [#allocation2], %s1316
        %v1318 = vld [vmem:[%s1317] sm:$0xf]
        %v1319 = vld [vmem:[%s1317 + $0x4] sm:$0xf]
        %v1322 = vunpack.c.l.b16 %v1318
        %v1323 = vunpack.c.l.b16 %v1319
        %v1324 = vpack.c.b16 %v1323, %v1322
        %v1327 = vsel %vm862, %v1311, 0
        %1329 = vmatprep.subr.bf16.mxu0 0
        %1330 = vmatpush1.bf16.msra.mxu0 0
        %1331 = vmatprep.subr.bf16.mxu0 0
        %1332 = vmatpush1.bf16.msra.mxu0 0
        %1333 = vmatprep.subr.bf16.mxu0 0
        %1334 = vmatpush1.bf16.msra.mxu0 0
        %1335 = vmatprep.subr.bf16.mxu0 0
        %1336 = vmatpush1.bf16.msra.mxu0 0
        %1337 = vmatprep.subr.bf16.mxu0 0
        %1338 = vmatpush1.bf16.msra.mxu0 0
        %1339 = vmatprep.subr.bf16.mxu0 0
        %1340 = vmatpush1.bf16.msra.mxu0 0
        %1341 = vmatprep.subr.bf16.mxu0 0
        %1342 = vmatpush1.bf16.msra.mxu0 0
        %1343 = vmatprep.subr.bf16.mxu0 0
        %1344 = vmatpush1.bf16.msra.mxu0 %v1324
        %1345 = vmatprep.subr.bf16.mxu0 0
        %1346 = vmatpush2.bf16.msra.mxu0 0
        %1347 = vmatprep.subr.bf16.mxu0 0
        %1348 = vmatpush2.bf16.msra.mxu0 0
        %1349 = vmatprep.subr.bf16.mxu0 0
        %1350 = vmatpush2.bf16.msra.mxu0 0
        %1351 = vmatprep.subr.bf16.mxu0 0
        %1352 = vmatpush2.bf16.msra.mxu0 0
        %1353 = vmatprep.subr.bf16.mxu0 0
        %1354 = vmatpush2.bf16.msra.mxu0 0
        %1355 = vmatprep.subr.bf16.mxu0 0
        %1356 = vmatpush2.bf16.msra.mxu0 0
        %1357 = vmatprep.subr.bf16.mxu0 0
        %1358 = vmatpush2.bf16.msra.mxu0 0
        %1359 = vmatprep.subr.bf16.mxu0 0
        %1360 = vmatpush2.bf16.msra.mxu0 0
        %1361 = vmatprep.mubr.bf16.mxu0 0
        %1362 = vmatmul.mubr.bf16.gmra.mxu0 %v1327
        %v1363 = vpop.f32.mrf.mxu0
        %v1364 = vadd.f32 0.0, %v1363
        %v1365 = vpop.f32.mrf.mxu0
        %v1366 = vpop.f32.mrf.mxu0
        %v1367 = vadd.f32 0.0, %v1366
        %v1368 = vpop.f32.mrf.mxu0
        %1369 = vdwg.mxu0
        %v1370 = vadd.f32 %v1313, %v1364
        %v1371 = vadd.f32 %v1314, %v1367
        %1372 = vst.msk [vmem:[%s1312] sm:$0xff] %vm909, %v1370
        %1373 = vst.msk [vmem:[%s1312 + $0x8] sm:$0xff] %vm909, %v1371
        // Predicated region
        $region53: #{lognet_conv_layer.1} parent=43 // pred_check
          %p1374 = pneg %p321
        $region54: #{lognet_conv_layer.1} parent=43 // pred_check_branch
          %1376 = sbr.rel (%p1374) target = $region56
        $region55: #{lognet_conv_layer.1} parent=43 // pred_region
          %v1377 = vld [vmem:[#allocation3] sm:$0xff]
          %v1378 = vld [vmem:[#allocation3 + $0x8] sm:$0xff]
          %v1379 = vld [vmem:[%s3] sm:$0x1]
          %v1381 = vlaneseq
          %v1382 = vshrl.u32 %v1381, 7
          %v1383 = vsub.s32 0, %v1382
          %v1384 = vrot.slane %v1379, %v1383
          %v1386 = vadd.f32 %v1377, %v1384
          %v1387 = vadd.f32 %v1378, %v1384
          %v1388 = vmax.f32 %v1386, 0.0
          %v1389 = vmax.f32 %v1387, 0.0
          %v1390 = vadd.f32 %v1388, 0.0
          %v1391 = vadd.f32 %v1389, 0.0
          %v1392 = vld [vmem:[%s916] sm:$0xff]
          %v1393 = vld [vmem:[%s916 + $0x8] sm:$0xff]
          %s1394 = scalar_lea.vmem %s3, 1
          %v1395 = vld [vmem:[%s1394] sm:$0x1]
          %v1397 = vlaneseq
          %v1398 = vshrl.u32 %v1397, 7
          %v1399 = vsub.s32 0, %v1398
          %v1400 = vrot.slane %v1395, %v1399
          %v1402 = vadd.f32 %v1392, %v1400
          %v1403 = vadd.f32 %v1393, %v1400
          %v1404 = vmax.f32 %v1402, 0.0
          %v1405 = vmax.f32 %v1403, 0.0
          %v1406 = vadd.f32 %v1390, %v1404
          %v1407 = vadd.f32 %v1391, %v1405
          %v1408 = vld [vmem:[%s982] sm:$0xff]
          %v1409 = vld [vmem:[%s982 + $0x8] sm:$0xff]
          %s1410 = scalar_lea.vmem %s3, 2
          %v1411 = vld [vmem:[%s1410] sm:$0x1]
          %v1413 = vlaneseq
          %v1414 = vshrl.u32 %v1413, 7
          %v1415 = vsub.s32 0, %v1414
          %v1416 = vrot.slane %v1411, %v1415
          %v1418 = vadd.f32 %v1408, %v1416
          %v1419 = vadd.f32 %v1409, %v1416
          %v1420 = vmax.f32 %v1418, 0.0
          %v1421 = vmax.f32 %v1419, 0.0
          %v1422 = vadd.f32 %v1406, %v1420
          %v1423 = vadd.f32 %v1407, %v1421
          %v1424 = vld [vmem:[%s1048] sm:$0xff]
          %v1425 = vld [vmem:[%s1048 + $0x8] sm:$0xff]
          %s1426 = scalar_lea.vmem %s3, 3
          %v1427 = vld [vmem:[%s1426] sm:$0x1]
          %v1429 = vlaneseq
          %v1430 = vshrl.u32 %v1429, 7
          %v1431 = vsub.s32 0, %v1430
          %v1432 = vrot.slane %v1427, %v1431
          %v1434 = vadd.f32 %v1424, %v1432
          %v1435 = vadd.f32 %v1425, %v1432
          %v1436 = vmax.f32 %v1434, 0.0
          %v1437 = vmax.f32 %v1435, 0.0
          %v1438 = vadd.f32 %v1422, %v1436
          %v1439 = vadd.f32 %v1423, %v1437
          %v1440 = vld [vmem:[%s1114] sm:$0xff]
          %v1441 = vld [vmem:[%s1114 + $0x8] sm:$0xff]
          %s1442 = scalar_lea.vmem %s3, 4
          %v1443 = vld [vmem:[%s1442] sm:$0x1]
          %v1445 = vlaneseq
          %v1446 = vshrl.u32 %v1445, 7
          %v1447 = vsub.s32 0, %v1446
          %v1448 = vrot.slane %v1443, %v1447
          %v1450 = vadd.f32 %v1440, %v1448
          %v1451 = vadd.f32 %v1441, %v1448
          %v1452 = vmax.f32 %v1450, 0.0
          %v1453 = vmax.f32 %v1451, 0.0
          %v1454 = vadd.f32 %v1438, %v1452
          %v1455 = vadd.f32 %v1439, %v1453
          %v1456 = vld [vmem:[%s1180] sm:$0xff]
          %v1457 = vld [vmem:[%s1180 + $0x8] sm:$0xff]
          %s1458 = scalar_lea.vmem %s3, 5
          %v1459 = vld [vmem:[%s1458] sm:$0x1]
          %v1461 = vlaneseq
          %v1462 = vshrl.u32 %v1461, 7
          %v1463 = vsub.s32 0, %v1462
          %v1464 = vrot.slane %v1459, %v1463
          %v1466 = vadd.f32 %v1456, %v1464
          %v1467 = vadd.f32 %v1457, %v1464
          %v1468 = vmax.f32 %v1466, 0.0
          %v1469 = vmax.f32 %v1467, 0.0
          %v1470 = vadd.f32 %v1454, %v1468
          %v1471 = vadd.f32 %v1455, %v1469
          %v1472 = vld [vmem:[%s1246] sm:$0xff]
          %v1473 = vld [vmem:[%s1246 + $0x8] sm:$0xff]
          %s1474 = scalar_lea.vmem %s3, 6
          %v1475 = vld [vmem:[%s1474] sm:$0x1]
          %v1477 = vlaneseq
          %v1478 = vshrl.u32 %v1477, 7
          %v1479 = vsub.s32 0, %v1478
          %v1480 = vrot.slane %v1475, %v1479
          %v1482 = vadd.f32 %v1472, %v1480
          %v1483 = vadd.f32 %v1473, %v1480
          %v1484 = vmax.f32 %v1482, 0.0
          %v1485 = vmax.f32 %v1483, 0.0
          %v1486 = vadd.f32 %v1470, %v1484
          %v1487 = vadd.f32 %v1471, %v1485
          %v1488 = vld [vmem:[%s1312] sm:$0xff]
          %v1489 = vld [vmem:[%s1312 + $0x8] sm:$0xff]
          %s1490 = scalar_lea.vmem %s3, 7
          %v1491 = vld [vmem:[%s1490] sm:$0x1]
          %v1493 = vlaneseq
          %v1494 = vshrl.u32 %v1493, 7
          %v1495 = vsub.s32 0, %v1494
          %v1496 = vrot.slane %v1491, %v1495
          %v1498 = vadd.f32 %v1488, %v1496
          %v1499 = vadd.f32 %v1489, %v1496
          %v1500 = vmax.f32 %v1498, 0.0
          %v1501 = vmax.f32 %v1499, 0.0
          %v1502 = vadd.f32 %v1486, %v1500
          %v1503 = vadd.f32 %v1487, %v1501
          %v1504 = vpack.c.bf16 %v1503, %v1502
          %v1505 = vld [vmem:[%s4] sm:$0xf]
          %v1506 = vld [vmem:[%s4 + $0x4] sm:$0xf]
          %v1507 = vld [vmem:[%s4 + $0x8] sm:$0xf]
          %v1508 = vld [vmem:[%s4 + $0xc] sm:$0xf]
          %v1509 = vld [vmem:[%s5] sm:$0x1]
          %v1511 = vlaneseq
          %v1512 = vshrl.u32 %v1511, 7
          %v1513 = vsub.s32 0, %v1512
          %v1514 = vrot.slane %v1509, %v1513
          %v1520 = vunpack.c.l.b16 %v1505
          %v1521 = vunpack.c.l.b16 %v1506
          %v1522 = vunpack.c.l.b16 %v1507
          %v1523 = vunpack.c.l.b16 %v1508
          %v1524 = vpack.c.b16 %v1521, %v1520
          %v1525 = vpack.c.b16 %v1523, %v1522
          %v1529 = vsel %vm909, %v1504, 0
          %1531 = vmatprep.subr.bf16.mxu0 0
          %1532 = vmatpush1.bf16.msra.mxu0 0
          %1533 = vmatprep.subr.bf16.mxu0 0
          %1534 = vmatpush1.bf16.msra.mxu0 0
          %1535 = vmatprep.subr.bf16.mxu0 0
          %1536 = vmatpush1.bf16.msra.mxu0 0
          %1537 = vmatprep.subr.bf16.mxu0 0
          %1538 = vmatpush1.bf16.msra.mxu0 0
          %1539 = vmatprep.subr.bf16.mxu0 0
          %1540 = vmatpush1.bf16.msra.mxu0 0
          %1541 = vmatprep.subr.bf16.mxu0 0
          %1542 = vmatpush1.bf16.msra.mxu0 0
          %1543 = vmatprep.subr.bf16.mxu0 0
          %1544 = vmatpush1.bf16.msra.mxu0 %v1525
          %1545 = vmatprep.subr.bf16.mxu0 0
          %1546 = vmatpush1.bf16.msra.mxu0 %v1524
          %1547 = vmatprep.subr.bf16.mxu0 0
          %1548 = vmatpush2.bf16.msra.mxu0 0
          %1549 = vmatprep.subr.bf16.mxu0 0
          %1550 = vmatpush2.bf16.msra.mxu0 0
          %1551 = vmatprep.subr.bf16.mxu0 0
          %1552 = vmatpush2.bf16.msra.mxu0 0
          %1553 = vmatprep.subr.bf16.mxu0 0
          %1554 = vmatpush2.bf16.msra.mxu0 0
          %1555 = vmatprep.subr.bf16.mxu0 0
          %1556 = vmatpush2.bf16.msra.mxu0 0
          %1557 = vmatprep.subr.bf16.mxu0 0
          %1558 = vmatpush2.bf16.msra.mxu0 0
          %1559 = vmatprep.subr.bf16.mxu0 0
          %1560 = vmatpush2.bf16.msra.mxu0 0
          %1561 = vmatprep.subr.bf16.mxu0 0
          %1562 = vmatpush2.bf16.msra.mxu0 0
          %1563 = vmatprep.mubr.bf16.mxu0 0
          %1564 = vmatmul.mubr.bf16.gmra.mxu0 %v1529
          %v1565 = vpop.f32.mrf.mxu0
          %v1566 = vadd.f32 %v1514, %v1565
          %v1567 = vpop.f32.mrf.mxu0
          %v1568 = vpop.f32.mrf.mxu0
          %v1569 = vadd.f32 %v1514, %v1568
          %v1570 = vpop.f32.mrf.mxu0
          %1571 = vdwg.mxu0
          %1572 = vst.msk [vmem:[%s299] sm:$0xff] %vm909, %v1566
          %1573 = vst.msk [vmem:[%s299 + $0x8] sm:$0xff] %vm909, %v1569
        $region56: #{lognet_conv_layer.1} parent=43 // pred_fallthru
          _
        %s1574 = sand.u32 %s189, 1
        %s1575 = scalar_lea.sflag [#allocation5], %s1574
        %s1576 = sand.u32 %s189, 1
        %s1577 = smul.addr %s1576, 16
        %s1578 = scalar_lea.vmem [#allocation4], %s1577
        // Predicated region
        $region57: #{lognet_conv_layer.1} parent=43 // pred_check
          %p1579 = pneg %p199
        $region58: #{lognet_conv_layer.1} parent=43 // pred_check_branch
          %1581 = sbr.rel (%p1579) target = $region60
        $region59: #{lognet_conv_layer.1} parent=43 // pred_region
          %s1582 = smul.u32 2, %s26
          %s1584 = ssub.s32 256, 256
          %1585 = vsyncadd %s1575, %s1584
          %s1586 = smul.addr %s25, 2
          %s1587 = sadd.s32 %s1582, %s1586
          %s1588 = smul.addr %s1587, 128
          %s1589 = scalar_lea.hbm %s6, %s1588
          %s1590 = sshll.u32 %s1578, 4
          %s1591 = int_to_ptr.vmem [resolvable:$true] %s1590
          %1596 = dma.vmem_to_hbm [thread:$0]  %s1591, 256, %s1589, %s1575, 128, 128, 8
        $region60: #{lognet_conv_layer.1} parent=43 // pred_fallthru
          _
      $region44: #{lognet_conv_layer.1} parent=5 // pred_fallthru
        _
      %p1597 = scmp.le.s32.totalorder 2, %s15
      // Predicated region
      $region61: #{lognet_conv_layer.1} parent=5 // pred_check
        %p1598 = pneg %p1597
      $region62: #{lognet_conv_layer.1} parent=5 // pred_check_branch
        %1600 = sbr.rel (%p1598) target = $region64
      $region63: #{lognet_conv_layer.1} parent=5 // pred_region
        %s1601 = ssub.s32 %s15, 2
        // Predicated region
        $region65: #{lognet_conv_layer.1} parent=63 // pred_check
          %p1602 = pneg %p205
        $region66: #{lognet_conv_layer.1} parent=63 // pred_check_branch
          %1604 = sbr.rel (%p1602) target = $region68
        $region67: #{lognet_conv_layer.1} parent=63 // pred_region
          %s1605 = sand.u32 %s190, 1
          %s1606 = scalar_lea.sflag [#allocation5], %s1605
          %s1607 = sand.u32 %s190, 1
          %s1608 = smul.addr %s1607, 16
          %s1609 = scalar_lea.vmem [#allocation4], %s1608
          %1610 = dma.done %s1606, 256
        $region68: #{lognet_conv_layer.1} parent=63 // pred_fallthru
          _
      $region64: #{lognet_conv_layer.1} parent=5 // pred_fallthru
        _
    $region6: #{lognet_conv_layer.1} parent=1 // loop_footer
      %s19 = sadd.s32 1, %s15
    $region7: #{lognet_conv_layer.1} parent=1 // loop_footer_branch
      %14 = sbr.rel target = $region3
    $region8: #{lognet_conv_layer.1} parent=1 // loop_exit
      _
    %1611 = vsyncpa [#allocation5], 1
    %s1612 = scalar_lea.sflag [#allocation5], 1
    %1613 = vsyncpa %s1612, 1

</llo_original>
